<compile_context>
chip_gen: v7x
topology: tpu7x:2x2x1
jax: 0.10.0
libtpu: 0.0.40
codegen_flags: <defaults>
</compile_context>

<pallas_src>
import jax
import jax.numpy as jnp
from jax import lax
from jax.experimental import pallas as pl
from jax.experimental.pallas import tpu as pltpu

C = 3                 # image channels
H_IMG = W_IMG = 16    # spatial
HW = H_IMG * W_IMG
N_EXT = 4             # number of feature extractors
FEAT = 256            # per-backbone feature dim (stand-in for 2048)
HIDDEN = 128          # GRU hidden size (stand-in for 512)
NUM_CLASSES = 1
IN_DIM = N_EXT * FEAT
OUT_PAD = 128         # lane-dense padded FC output width


# ---------------------------------------------------------------------------
# Fused kernel: mask*img -> global avg pool -> per-backbone projection ->
#               GRU recurrence (input projection hoisted) -> FC -> swish
# ---------------------------------------------------------------------------
def _fused_forward_kernel(x_ref, m_ref, wext_ref, bext_ref,
                          wih_ref, bih_ref, whh_ref, bhh_ref,
                          wfc_ref, bfc_ref, o_ref, gi_scr):
    # x_ref   : (B, C, HW)  f32   images, NC(HW) layout
    # m_ref   : (B, 1, HW)  f32   binary segmentation masks
    # wext_ref: (C, IN)     f32   flattened per-backbone projection weights
    # bext_ref: (1, IN)     f32
    # wih_ref : (IN, 3H)    bf16  (weight_ih_l0 transposed)
    # bih_ref : (1, 3H)     f32
    # whh_ref : (H, 3H)     bf16  (weight_hh_l0 transposed)
    # bhh_ref : (1, 3H)     f32
    # wfc_ref : (H, OUT_PAD) f32  (fc weight transposed + lane-padded)
    # bfc_ref : (1, OUT_PAD) f32
    # o_ref   : (1, OUT_PAD) f32
    # gi_scr  : (B, 3H)     f32   VMEM scratch for hoisted input projection
    seq = x_ref.shape[0]
    hdim = whh_ref.shape[0]

    # --- masked global average pool, all images at once ---------------------
    masked = x_ref[...] * m_ref[...]                               # (B, C, HW)
    pooled = jnp.mean(masked, axis=-1, keepdims=True)              # (B, C, 1)

    # --- per-backbone linear projection (stand-in for the 4 CNNs) -----------
    feats = jnp.sum(pooled * wext_ref[...][None, :, :], axis=1)    # (B, IN)
    feats = feats + bext_ref[...]

    # --- hoisted GRU input projection: one MXU matmul for all timesteps -----
    gi_scr[...] = (jnp.dot(feats.astype(jnp.bfloat16), wih_ref[...],
                           preferred_element_type=jnp.float32)
                   + bih_ref[...])                                 # (B, 3H) f32

    whh = whh_ref[...]
    bhh = bhh_ref[...]

    # --- GRU recurrence: only h @ whh on the serial path ---------------------
    def step(t, h):
        gi = gi_scr[pl.ds(t, 1), :]                                # (1, 3H)
        gh = jnp.dot(h.astype(jnp.bfloat16), whh,
                     preferred_element_type=jnp.float32) + bhh     # (1, 3H)
        # PyTorch gate order: r, z, n
        r = jax.nn.sigmoid(gi[:, 0:hdim] + gh[:, 0:hdim])
        z = jax.nn.sigmoid(gi[:, hdim:2 * hdim] + gh[:, hdim:2 * hdim])
        n = jnp.tanh(gi[:, 2 * hdim:3 * hdim] + r * gh[:, 2 * hdim:3 * hdim])
        return (1.0 - z) * n + z * h

    h0 = jnp.zeros((1, hdim), jnp.float32)
    h_last = lax.fori_loop(0, seq, step, h0, unroll=True)          # (1, H)

    # --- FC (lane-padded to 128) + swish -------------------------------------
    logits = jnp.dot(h_last, wfc_ref[...],
                     preferred_element_type=jnp.float32) + bfc_ref[...]
    o_ref[...] = logits * jax.nn.sigmoid(logits)


# ---------------------------------------------------------------------------
# Wrapper (parameter layout prep in plain JAX, one pallas_call)
# ---------------------------------------------------------------------------
def forward(images, mask, p):
    B = images.shape[0]
    x = images.reshape(B, C, HW)
    m = mask.reshape(B, 1, HW)

    # flatten per-backbone projection: w_ext (E, C, F) -> (C, E*F) so that the
    # feature layout matches torch.cat(feature_vectors, dim=1)
    wext_flat = jnp.transpose(p["w_ext"], (1, 0, 2)).reshape(C, IN_DIM)
    bext_flat = p["b_ext"].reshape(1, IN_DIM)

    # GRU weights: transpose and cast to bf16 (f32 accumulation in-kernel)
    wih_t = p["wih"].T.astype(jnp.bfloat16)            # (IN, 3H)
    whh_t = p["whh"].T.astype(jnp.bfloat16)            # (H, 3H)
    bih = p["bih"][None, :].astype(jnp.float32)
    bhh = p["bhh"][None, :].astype(jnp.float32)

    # FC: transpose + lane-pad to 128 so the final store is unmasked
    wfc_pad = jnp.zeros((HIDDEN, OUT_PAD), jnp.float32).at[:, :NUM_CLASSES].set(
        p["wfc"].T)
    bfc_pad = jnp.zeros((1, OUT_PAD), jnp.float32).at[:, :NUM_CLASSES].set(
        p["bfc"][None, :])

    out_pad = pl.pallas_call(
        _fused_forward_kernel,
        out_shape=jax.ShapeDtypeStruct((1, OUT_PAD), jnp.float32),
        scratch_shapes=[pltpu.VMEM((B, 3 * HIDDEN), jnp.float32)],
    )(x, m, wext_flat, bext_flat, wih_t, bih, whh_t, bhh, wfc_pad, bfc_pad)

    return out_pad[:, :NUM_CLASSES]                    # (1, NUM_CLASSES)


# ---------------------------------------------------------------------------
# Pure-JAX reference (matmul_dtype=bf16 mirrors the kernel's mixed precision)
# ---------------------------------------------------------------------------
def ref_forward(images, mask, p, matmul_dtype=jnp.float32):
    B = images.shape[0]
    x = images.reshape(B, C, HW) * mask.reshape(B, 1, HW)
    pooled = x.mean(axis=2)                                        # (B, C)
    feats = jnp.einsum("bc,ecf->bef", pooled, p["w_ext"]) + p["b_ext"][None]
    seq = feats.reshape(B, IN_DIM)                                 # cat(dim=1)

    wih_t = p["wih"].T.astype(matmul_dtype)
    whh_t = p["whh"].T.astype(matmul_dtype)
    gi_all = jnp.dot(seq.astype(matmul_dtype), wih_t,
                     preferred_element_type=jnp.float32) + p["bih"][None]

    h = jnp.zeros((1, HIDDEN), jnp.float32)
    for t in range(B):
        gi = gi_all[t:t + 1]
        gh = jnp.dot(h.astype(matmul_dtype), whh_t,
                     preferred_element_type=jnp.float32) + p["bhh"][None]
        r = jax.nn.sigmoid(gi[:, :HIDDEN] + gh[:, :HIDDEN])
        z = jax.nn.sigmoid(gi[:, HIDDEN:2 * HIDDEN] + gh[:, HIDDEN:2 * HIDDEN])
        n = jnp.tanh(gi[:, 2 * HIDDEN:] + r * gh[:, 2 * HIDDEN:])
        h = (1.0 - z) * n + z * h

    logits = h @ p["wfc"].T + p["bfc"][None]
    return logits * jax.nn.sigmoid(logits)


if __name__ == "__main__":
    key = jax.random.PRNGKey(0)
    ks = jax.random.split(key, 10)

    B = 2  # number of images -> GRU sequence length
    images = jax.random.uniform(ks[0], (B, C, H_IMG, W_IMG), jnp.float32)
    # synthetic binary segmentation masks (stand-in for Mask R-CNN output > 0.5)
    mask = (jax.random.uniform(ks[1], (B, H_IMG, W_IMG)) > 0.5).astype(jnp.float32)

    s = 1.0 / jnp.sqrt(jnp.float32(HIDDEN))
    params = {
        "w_ext": jax.random.normal(ks[2], (N_EXT, C, FEAT), jnp.float32) * 0.1,
        "b_ext": jax.random.normal(ks[3], (N_EXT, FEAT), jnp.float32) * 0.01,
        "wih": jax.random.uniform(ks[4], (3 * HIDDEN, IN_DIM), jnp.float32, -s, s),
        "whh": jax.random.uniform(ks[5], (3 * HIDDEN, HIDDEN), jnp.float32, -s, s),
        "bih": jax.random.uniform(ks[6], (3 * HIDDEN,), jnp.float32, -s, s),
        "bhh": jax.random.uniform(ks[7], (3 * HIDDEN,), jnp.float32, -s, s),
        "wfc": jax.random.uniform(ks[8], (NUM_CLASSES, HIDDEN), jnp.float32, -s, s),
        "bfc": jax.random.uniform(ks[9], (NUM_CLASSES,), jnp.float32, -s, s),
    }

    out = jax.block_until_ready(forward(images, mask, params))
    assert out.shape == (1, NUM_CLASSES), out.shape

    # tight check against a reference that uses the same bf16 matmul precision
    ref_bf16 = ref_forward(images, mask, params, matmul_dtype=jnp.bfloat16)
    assert jnp.allclose(out, ref_bf16, atol=1e-3, rtol=1e-3), (out, ref_bf16)

    # sanity check against the pure-f32 reference (bf16 rounding slack)
    ref_f32 = ref_forward(images, mask, params, matmul_dtype=jnp.float32)
    assert jnp.allclose(out, ref_f32, atol=2e-2, rtol=2e-2), (out, ref_f32)

    print("KERNEL_OK")
</pallas_src>

<mosaic_0001>
module attributes {stable_mosaic.version = 11 : i64} {
  func.func @_fused_forward_kernel(%arg0: memref<2x3x256xf32, #tpu.memory_space<vmem>>, %arg1: memref<2x1x256xf32, #tpu.memory_space<vmem>>, %arg2: memref<3x1024xf32, #tpu.memory_space<vmem>>, %arg3: memref<1x1024xf32, #tpu.memory_space<vmem>>, %arg4: memref<1024x384xbf16, #tpu.memory_space<vmem>>, %arg5: memref<1x384xf32, #tpu.memory_space<vmem>>, %arg6: memref<128x384xbf16, #tpu.memory_space<vmem>>, %arg7: memref<1x384xf32, #tpu.memory_space<vmem>>, %arg8: memref<128x128xf32, #tpu.memory_space<vmem>>, %arg9: memref<1x128xf32, #tpu.memory_space<vmem>>, %arg10: memref<1x128xf32, #tpu.memory_space<vmem>>, %arg11: memref<2x384xf32, #tpu.memory_space<vmem>>) attributes {dimension_semantics = [], scalar_prefetch = 0 : i64, scratch_operands = 1 : i64, tpu.core_type = #tpu.core_type<tc>} {
    %c0 = arith.constant 0 : index
    %c0_0 = arith.constant 0 : index
    %c0_1 = arith.constant 0 : index
    %0 = vector.load %arg0[%c0, %c0_0, %c0_1] : memref<2x3x256xf32, #tpu.memory_space<vmem>>, vector<2x3x256xf32>
    %c0_2 = arith.constant 0 : index
    %c0_3 = arith.constant 0 : index
    %c0_4 = arith.constant 0 : index
    %1 = vector.load %arg1[%c0_2, %c0_3, %c0_4] : memref<2x1x256xf32, #tpu.memory_space<vmem>>, vector<2x1x256xf32>
    %2 = vector.broadcast %1 : vector<2x1x256xf32> to vector<2x3x256xf32>
    %3 = arith.mulf %0, %2 : vector<2x3x256xf32>
    %cst = arith.constant dense<0.000000e+00> : vector<2x3xf32>
    %4 = vector.multi_reduction <add>, %3, %cst [2] : vector<2x3x256xf32> to vector<2x3xf32>
    %5 = vector.shape_cast %4 : vector<2x3xf32> to vector<2x3x1xf32>
    %cst_5 = arith.constant 2.560000e+02 : f32
    %6 = vector.broadcast %cst_5 : f32 to vector<2x3x1xf32>
    %7 = arith.divf %5, %6 : vector<2x3x1xf32>
    %c0_6 = arith.constant 0 : index
    %c0_7 = arith.constant 0 : index
    %8 = vector.load %arg2[%c0_6, %c0_7] : memref<3x1024xf32, #tpu.memory_space<vmem>>, vector<3x1024xf32>
    %9 = vector.shape_cast %8 : vector<3x1024xf32> to vector<1x3x1024xf32>
    %10 = vector.broadcast %7 : vector<2x3x1xf32> to vector<2x3x1024xf32>
    %11 = vector.broadcast %9 : vector<1x3x1024xf32> to vector<2x3x1024xf32>
    %12 = arith.mulf %10, %11 : vector<2x3x1024xf32>
    %cst_8 = arith.constant dense<0.000000e+00> : vector<2x1024xf32>
    %13 = vector.multi_reduction <add>, %12, %cst_8 [1] : vector<2x3x1024xf32> to vector<2x1024xf32>
    %c0_9 = arith.constant 0 : index
    %c0_10 = arith.constant 0 : index
    %14 = vector.load %arg3[%c0_9, %c0_10] : memref<1x1024xf32, #tpu.memory_space<vmem>>, vector<1x1024xf32>
    %15 = vector.broadcast %14 : vector<1x1024xf32> to vector<2x1024xf32>
    %16 = arith.addf %13, %15 : vector<2x1024xf32>
    %17 = arith.truncf %16 : vector<2x1024xf32> to vector<2x1024xbf16>
    %c0_11 = arith.constant 0 : index
    %c0_12 = arith.constant 0 : index
    %18 = vector.load %arg4[%c0_11, %c0_12] : memref<1024x384xbf16, #tpu.memory_space<vmem>>, vector<1024x384xbf16>
    %cst_13 = arith.constant dense<0.000000e+00> : vector<2x384xf32>
    %19 = tpu.matmul %17, %18, %cst_13 {dimension_numbers = #tpu.dot_dimension_numbers<[1], [0], [0], [1], [0, 0, 1, 1], [], []>} : vector<2x1024xbf16>, vector<1024x384xbf16>, vector<2x384xf32> -> vector<2x384xf32>
    %c0_14 = arith.constant 0 : index
    %c0_15 = arith.constant 0 : index
    %20 = vector.load %arg5[%c0_14, %c0_15] : memref<1x384xf32, #tpu.memory_space<vmem>>, vector<1x384xf32>
    %21 = vector.broadcast %20 : vector<1x384xf32> to vector<2x384xf32>
    %22 = arith.addf %19, %21 : vector<2x384xf32>
    %c0_16 = arith.constant 0 : index
    %c0_17 = arith.constant 0 : index
    %23 = vector.load %arg11[%c0_16, %c0_17] : memref<2x384xf32, #tpu.memory_space<vmem>>, vector<2x384xf32>
    tpu.vector_store %arg11[%c0_16, %c0_17], %22 {strides = array<i32>} : memref<2x384xf32, #tpu.memory_space<vmem>>, vector<2x384xf32>,
    %c0_18 = arith.constant 0 : index
    %c0_19 = arith.constant 0 : index
    %24 = vector.load %arg6[%c0_18, %c0_19] : memref<128x384xbf16, #tpu.memory_space<vmem>>, vector<128x384xbf16>
    %c0_20 = arith.constant 0 : index
    %c0_21 = arith.constant 0 : index
    %25 = vector.load %arg7[%c0_20, %c0_21] : memref<1x384xf32, #tpu.memory_space<vmem>>, vector<1x384xf32>
    %cst_22 = arith.constant 0.000000e+00 : f32
    %26 = vector.broadcast %cst_22 : f32 to vector<1x128xf32>
    %c0_i32 = arith.constant 0 : i32
    %27 = arith.index_cast %c0_i32 : i32 to index
    %c0_23 = arith.constant 0 : index
    %28 = vector.load %arg11[%27, %c0_23] : memref<2x384xf32, #tpu.memory_space<vmem>>, vector<1x384xf32>
    %29 = arith.truncf %26 : vector<1x128xf32> to vector<1x128xbf16>
    %cst_24 = arith.constant dense<0.000000e+00> : vector<1x384xf32>
    %30 = tpu.matmul %29, %24, %cst_24 {dimension_numbers = #tpu.dot_dimension_numbers<[1], [0], [0], [1], [0, 0, 1, 1], [], []>} : vector<1x128xbf16>, vector<128x384xbf16>, vector<1x384xf32> -> vector<1x384xf32>
    %31 = arith.addf %30, %25 : vector<1x384xf32>
    %32 = vector.extract_strided_slice %28 {offsets = [0, 0], sizes = [1, 128], strides = [1, 1]} : vector<1x384xf32> to vector<1x128xf32>
    %33 = vector.extract_strided_slice %31 {offsets = [0, 0], sizes = [1, 128], strides = [1, 1]} : vector<1x384xf32> to vector<1x128xf32>
    %34 = arith.addf %32, %33 : vector<1x128xf32>
    %35 = arith.negf %34 : vector<1x128xf32>
    %36 = math.exp %35 : vector<1x128xf32>
    %cst_25 = arith.constant 1.000000e+00 : f32
    %37 = vector.broadcast %cst_25 : f32 to vector<1x128xf32>
    %38 = arith.addf %37, %36 : vector<1x128xf32>
    %39 = arith.divf %37, %38 : vector<1x128xf32>
    %40 = vector.extract_strided_slice %28 {offsets = [0, 128], sizes = [1, 128], strides = [1, 1]} : vector<1x384xf32> to vector<1x128xf32>
    %41 = vector.extract_strided_slice %31 {offsets = [0, 128], sizes = [1, 128], strides = [1, 1]} : vector<1x384xf32> to vector<1x128xf32>
    %42 = arith.addf %40, %41 : vector<1x128xf32>
    %43 = arith.negf %42 : vector<1x128xf32>
    %44 = math.exp %43 : vector<1x128xf32>
    %cst_26 = arith.constant 1.000000e+00 : f32
    %45 = vector.broadcast %cst_26 : f32 to vector<1x128xf32>
    %46 = arith.addf %45, %44 : vector<1x128xf32>
    %47 = arith.divf %45, %46 : vector<1x128xf32>
    %48 = vector.extract_strided_slice %28 {offsets = [0, 256], sizes = [1, 128], strides = [1, 1]} : vector<1x384xf32> to vector<1x128xf32>
    %49 = vector.extract_strided_slice %31 {offsets = [0, 256], sizes = [1, 128], strides = [1, 1]} : vector<1x384xf32> to vector<1x128xf32>
    %50 = arith.mulf %39, %49 : vector<1x128xf32>
    %51 = arith.addf %48, %50 : vector<1x128xf32>
    %52 = math.tanh %51 : vector<1x128xf32>
    %cst_27 = arith.constant 1.000000e+00 : f32
    %53 = vector.broadcast %cst_27 : f32 to vector<1x128xf32>
    %54 = arith.subf %53, %47 : vector<1x128xf32>
    %55 = arith.mulf %54, %52 : vector<1x128xf32>
    %56 = arith.mulf %47, %26 : vector<1x128xf32>
    %57 = arith.addf %55, %56 : vector<1x128xf32>
    %c1_i32 = arith.constant 1 : i32
    %58 = arith.index_cast %c1_i32 : i32 to index
    %c0_28 = arith.constant 0 : index
    %59 = vector.load %arg11[%58, %c0_28] : memref<2x384xf32, #tpu.memory_space<vmem>>, vector<1x384xf32>
    %60 = arith.truncf %57 : vector<1x128xf32> to vector<1x128xbf16>
    %cst_29 = arith.constant dense<0.000000e+00> : vector<1x384xf32>
    %61 = tpu.matmul %60, %24, %cst_29 {dimension_numbers = #tpu.dot_dimension_numbers<[1], [0], [0], [1], [0, 0, 1, 1], [], []>} : vector<1x128xbf16>, vector<128x384xbf16>, vector<1x384xf32> -> vector<1x384xf32>
    %62 = arith.addf %61, %25 : vector<1x384xf32>
    %63 = vector.extract_strided_slice %59 {offsets = [0, 0], sizes = [1, 128], strides = [1, 1]} : vector<1x384xf32> to vector<1x128xf32>
    %64 = vector.extract_strided_slice %62 {offsets = [0, 0], sizes = [1, 128], strides = [1, 1]} : vector<1x384xf32> to vector<1x128xf32>
    %65 = arith.addf %63, %64 : vector<1x128xf32>
    %66 = arith.negf %65 : vector<1x128xf32>
    %67 = math.exp %66 : vector<1x128xf32>
    %cst_30 = arith.constant 1.000000e+00 : f32
    %68 = vector.broadcast %cst_30 : f32 to vector<1x128xf32>
    %69 = arith.addf %68, %67 : vector<1x128xf32>
    %70 = arith.divf %68, %69 : vector<1x128xf32>
    %71 = vector.extract_strided_slice %59 {offsets = [0, 128], sizes = [1, 128], strides = [1, 1]} : vector<1x384xf32> to vector<1x128xf32>
    %72 = vector.extract_strided_slice %62 {offsets = [0, 128], sizes = [1, 128], strides = [1, 1]} : vector<1x384xf32> to vector<1x128xf32>
    %73 = arith.addf %71, %72 : vector<1x128xf32>
    %74 = arith.negf %73 : vector<1x128xf32>
    %75 = math.exp %74 : vector<1x128xf32>
    %cst_31 = arith.constant 1.000000e+00 : f32
    %76 = vector.broadcast %cst_31 : f32 to vector<1x128xf32>
    %77 = arith.addf %76, %75 : vector<1x128xf32>
    %78 = arith.divf %76, %77 : vector<1x128xf32>
    %79 = vector.extract_strided_slice %59 {offsets = [0, 256], sizes = [1, 128], strides = [1, 1]} : vector<1x384xf32> to vector<1x128xf32>
    %80 = vector.extract_strided_slice %62 {offsets = [0, 256], sizes = [1, 128], strides = [1, 1]} : vector<1x384xf32> to vector<1x128xf32>
    %81 = arith.mulf %70, %80 : vector<1x128xf32>
    %82 = arith.addf %79, %81 : vector<1x128xf32>
    %83 = math.tanh %82 : vector<1x128xf32>
    %cst_32 = arith.constant 1.000000e+00 : f32
    %84 = vector.broadcast %cst_32 : f32 to vector<1x128xf32>
    %85 = arith.subf %84, %78 : vector<1x128xf32>
    %86 = arith.mulf %85, %83 : vector<1x128xf32>
    %87 = arith.mulf %78, %57 : vector<1x128xf32>
    %88 = arith.addf %86, %87 : vector<1x128xf32>
    %c2_i32 = arith.constant 2 : i32
    %c0_33 = arith.constant 0 : index
    %c0_34 = arith.constant 0 : index
    %89 = vector.load %arg8[%c0_33, %c0_34] : memref<128x128xf32, #tpu.memory_space<vmem>>, vector<128x128xf32>
    %cst_35 = arith.constant dense<0.000000e+00> : vector<1x128xf32>
    %90 = tpu.matmul %88, %89, %cst_35 {dimension_numbers = #tpu.dot_dimension_numbers<[1], [0], [0], [1], [0, 0, 1, 1], [], []>} : vector<1x128xf32>, vector<128x128xf32>, vector<1x128xf32> -> vector<1x128xf32>
    %c0_36 = arith.constant 0 : index
    %c0_37 = arith.constant 0 : index
    %91 = vector.load %arg9[%c0_36, %c0_37] : memref<1x128xf32, #tpu.memory_space<vmem>>, vector<1x128xf32>
    %92 = arith.addf %90, %91 : vector<1x128xf32>
    %93 = arith.negf %92 : vector<1x128xf32>
    %94 = math.exp %93 : vector<1x128xf32>
    %cst_38 = arith.constant 1.000000e+00 : f32
    %95 = vector.broadcast %cst_38 : f32 to vector<1x128xf32>
    %96 = arith.addf %95, %94 : vector<1x128xf32>
    %97 = arith.divf %95, %96 : vector<1x128xf32>
    %98 = arith.mulf %92, %97 : vector<1x128xf32>
    %c0_39 = arith.constant 0 : index
    %c0_40 = arith.constant 0 : index
    %99 = vector.load %arg10[%c0_39, %c0_40] : memref<1x128xf32, #tpu.memory_space<vmem>>, vector<1x128xf32>
    tpu.vector_store %arg10[%c0_39, %c0_40], %98 {strides = array<i32>} : memref<1x128xf32, #tpu.memory_space<vmem>>, vector<1x128xf32>,
    return
  }
}

</mosaic_0001>

<llo_original>
// kernel: tpu_custom_call.1
$region0: #{tpu_custom_call.1}
  #allocation0 [shape = 'u32[]', space=smem, size = 0x4, offset = 0x4, fixed_abs, tag = 'smem constant byte address 0x4 - core index']
  #allocation1 [shape = 'u32[144,128]{1,0:T(1,128)}', space=vmem, size = 0x12000, scoped, tag = 'internal scratch']
  #allocation2 [shape = 'f32[2,384]{1,0:T(2,128)}', space=vmem, size = 0xc00, scoped, tag = 'scratch operand']
  %s0 = inlined_call_operand.vmem [shape: f32[2,3,256], index: 0, kind: input, shape index: {}]
  %s1 = inlined_call_operand.hbm [shape: f32[2,1,256], index: 1, kind: input, shape index: {}]
  %s2 = inlined_call_operand.vmem [shape: f32[3,1024], index: 2, kind: input, shape index: {}]
  %s3 = inlined_call_operand.hbm [shape: f32[1,1024], index: 3, kind: input, shape index: {}]
  %s4 = inlined_call_operand.hbm [shape: bf16[1024,384], index: 4, kind: input, shape index: {}]
  %s5 = inlined_call_operand.vmem [shape: f32[1,384], index: 5, kind: input, shape index: {}]
  %s6 = inlined_call_operand.hbm [shape: bf16[128,384], index: 6, kind: input, shape index: {}]
  %s7 = inlined_call_operand.vmem [shape: f32[1,384], index: 7, kind: input, shape index: {}]
  %s8 = inlined_call_operand.hbm [shape: f32[128,128], index: 8, kind: input, shape index: {}]
  %s9 = inlined_call_operand.vmem [shape: f32[1,128], index: 9, kind: input, shape index: {}]
  %s10 = inlined_call_operand.hbm [shape: f32[1,128], index: 10, kind: output, shape index: {}]
  %s11 = sld [smem:[#allocation0]]
  $region70: #{tpu_custom_call.1} parent=0
    _
  %s13 = ssub.s32 1, %s11
  %s14 = scalar_select 0, %s13, %s11
  $region1: #{tpu_custom_call.1} parent=0
    #allocation3 [shape = 'u8[2048]{0}', space=vmem, size = 0x800, scoped, tag = 'input window, operand 1, single buffered']
    #allocation4 [shape = 's32[1]{0}', space=sflag, size = 0x4, scoped, tag = 'scoped memory for tpu_custom_call.1']
    #allocation5 [shape = 's32[1]{0}', space=sflag, size = 0x4, scoped, tag = 'scoped memory for tpu_custom_call.1']
    #allocation6 [shape = 'u8[4096]{0}', space=vmem, size = 0x1000, scoped, tag = 'input window, operand 3, single buffered']
    #allocation7 [shape = 's32[1]{0}', space=sflag, size = 0x4, scoped, tag = 'scoped memory for tpu_custom_call.1']
    #allocation8 [shape = 'u8[786432]{0}', space=vmem, size = 0xc0000, scoped, tag = 'input window, operand 4, single buffered']
    #allocation9 [shape = 'u8[98304]{0}', space=vmem, size = 0x18000, scoped, tag = 'input window, operand 6, single buffered']
    #allocation10 [shape = 's32[1]{0}', space=sflag, size = 0x4, scoped, tag = 'scoped memory for tpu_custom_call.1']
    #allocation11 [shape = 'u8[65536]{0}', space=vmem, size = 0x10000, scoped, tag = 'input window, operand 8, single buffered']
    #allocation12 [shape = 'u8[512]{0}', space=vmem, size = 0x400, scoped, tag = 'output window, operand 0, single buffered']
    %15 = vsyncpa [#allocation4], 0
    %16 = vsyncpa [#allocation7], 0
    %17 = vsyncpa [#allocation10], 0
    %18 = vsyncpa [#allocation5], 0
    // Predicated region
    $region2: #{tpu_custom_call.1} parent=1 // pred_check
      _
    $region3: #{tpu_custom_call.1} parent=1 // pred_check_branch
      %20 = sbr.rel (0) target = $region5
    $region4: #{tpu_custom_call.1} parent=1 // pred_region
      _
    $region5: #{tpu_custom_call.1} parent=1 // pred_fallthru
      _
    // Predicated region
    $region6: #{tpu_custom_call.1} parent=1 // pred_check
      _
    $region7: #{tpu_custom_call.1} parent=1 // pred_check_branch
      %22 = sbr.rel (0) target = $region9
    $region8: #{tpu_custom_call.1} parent=1 // pred_region
      %s24 = ssub.s32 64, 64
      %25 = vsyncadd [#allocation4], %s24
      %s26 = sshll.u32 [#allocation3], 4
      %s27 = int_to_ptr.vmem [resolvable:$true] %s26
      %32 = dma.hbm_to_vmem [thread:$0]  %s1, 64, %s27, [#allocation4], 32, 32, 2
    $region9: #{tpu_custom_call.1} parent=1 // pred_fallthru
      _
    // Predicated region
    $region10: #{tpu_custom_call.1} parent=1 // pred_check
      _
    $region11: #{tpu_custom_call.1} parent=1 // pred_check_branch
      %34 = sbr.rel (0) target = $region13
    $region12: #{tpu_custom_call.1} parent=1 // pred_region
      _
    $region13: #{tpu_custom_call.1} parent=1 // pred_fallthru
      _
    // Predicated region
    $region14: #{tpu_custom_call.1} parent=1 // pred_check
      _
    $region15: #{tpu_custom_call.1} parent=1 // pred_check_branch
      %36 = sbr.rel (0) target = $region17
    $region16: #{tpu_custom_call.1} parent=1 // pred_region
      %s38 = ssub.s32 128, 128
      %39 = vsyncadd [#allocation7], %s38
      %s41 = sshll.u32 [#allocation6], 4
      %s42 = int_to_ptr.vmem [resolvable:$true] %s41
      %44 = dma.hbm_to_vmem [thread:$0]  %s3, 128, %s42, [#allocation7]
    $region17: #{tpu_custom_call.1} parent=1 // pred_fallthru
      _
    // Predicated region
    $region18: #{tpu_custom_call.1} parent=1 // pred_check
      _
    $region19: #{tpu_custom_call.1} parent=1 // pred_check_branch
      %46 = sbr.rel (0) target = $region21
    $region20: #{tpu_custom_call.1} parent=1 // pred_region
      %s48 = ssub.s32 24576, 24576
      %49 = vsyncadd [#allocation7], %s48
      %s50 = sshll.u32 [#allocation8], 4
      %s51 = int_to_ptr.vmem [resolvable:$true] %s50
      %56 = dma.hbm_to_vmem [thread:$0]  %s4, 24576, %s51, [#allocation7], 192, 192, 12
    $region21: #{tpu_custom_call.1} parent=1 // pred_fallthru
      _
    // Predicated region
    $region22: #{tpu_custom_call.1} parent=1 // pred_check
      _
    $region23: #{tpu_custom_call.1} parent=1 // pred_check_branch
      %58 = sbr.rel (0) target = $region25
    $region24: #{tpu_custom_call.1} parent=1 // pred_region
      _
    $region25: #{tpu_custom_call.1} parent=1 // pred_fallthru
      _
    // Predicated region
    $region26: #{tpu_custom_call.1} parent=1 // pred_check
      _
    $region27: #{tpu_custom_call.1} parent=1 // pred_check_branch
      %60 = sbr.rel (0) target = $region29
    $region28: #{tpu_custom_call.1} parent=1 // pred_region
      %s62 = ssub.s32 3072, 3072
      %63 = vsyncadd [#allocation10], %s62
      %s64 = sshll.u32 [#allocation9], 4
      %s65 = int_to_ptr.vmem [resolvable:$true] %s64
      %70 = dma.hbm_to_vmem [thread:$0]  %s6, 3072, %s65, [#allocation10], 192, 192, 12
    $region29: #{tpu_custom_call.1} parent=1 // pred_fallthru
      _
    // Predicated region
    $region30: #{tpu_custom_call.1} parent=1 // pred_check
      _
    $region31: #{tpu_custom_call.1} parent=1 // pred_check_branch
      %72 = sbr.rel (0) target = $region33
    $region32: #{tpu_custom_call.1} parent=1 // pred_region
      _
    $region33: #{tpu_custom_call.1} parent=1 // pred_fallthru
      _
    // Predicated region
    $region34: #{tpu_custom_call.1} parent=1 // pred_check
      _
    $region35: #{tpu_custom_call.1} parent=1 // pred_check_branch
      %74 = sbr.rel (0) target = $region37
    $region36: #{tpu_custom_call.1} parent=1 // pred_region
      %s76 = ssub.s32 2048, 2048
      %77 = vsyncadd [#allocation10], %s76
      %s78 = sshll.u32 [#allocation11], 4
      %s79 = int_to_ptr.vmem [resolvable:$true] %s78
      %84 = dma.hbm_to_vmem [thread:$0]  %s8, 2048, %s79, [#allocation10], 128, 128, 8
    $region37: #{tpu_custom_call.1} parent=1 // pred_fallthru
      _
    // Predicated region
    $region38: #{tpu_custom_call.1} parent=1 // pred_check
      _
    $region39: #{tpu_custom_call.1} parent=1 // pred_check_branch
      %86 = sbr.rel (0) target = $region41
    $region40: #{tpu_custom_call.1} parent=1 // pred_region
      _
    $region41: #{tpu_custom_call.1} parent=1 // pred_fallthru
      _
    // Predicated region
    $region42: #{tpu_custom_call.1} parent=1 // pred_check
      _
    $region43: #{tpu_custom_call.1} parent=1 // pred_check_branch
      %88 = sbr.rel (0) target = $region45
    $region44: #{tpu_custom_call.1} parent=1 // pred_region
      %89 = dma.done [#allocation4], 64
    $region45: #{tpu_custom_call.1} parent=1 // pred_fallthru
      _
    // Predicated region
    $region46: #{tpu_custom_call.1} parent=1 // pred_check
      _
    $region47: #{tpu_custom_call.1} parent=1 // pred_check_branch
      %91 = sbr.rel (0) target = $region49
    $region48: #{tpu_custom_call.1} parent=1 // pred_region
      %92 = dma.done [#allocation7], 128
    $region49: #{tpu_custom_call.1} parent=1 // pred_fallthru
      _
    // Predicated region
    $region50: #{tpu_custom_call.1} parent=1 // pred_check
      _
    $region51: #{tpu_custom_call.1} parent=1 // pred_check_branch
      %94 = sbr.rel (0) target = $region53
    $region52: #{tpu_custom_call.1} parent=1 // pred_region
      %95 = dma.done [#allocation7], 24576
    $region53: #{tpu_custom_call.1} parent=1 // pred_fallthru
      _
    // Predicated region
    $region54: #{tpu_custom_call.1} parent=1 // pred_check
      _
    $region55: #{tpu_custom_call.1} parent=1 // pred_check_branch
      %97 = sbr.rel (0) target = $region57
    $region56: #{tpu_custom_call.1} parent=1 // pred_region
      %98 = dma.done [#allocation10], 3072
    $region57: #{tpu_custom_call.1} parent=1 // pred_fallthru
      _
    // Predicated region
    $region58: #{tpu_custom_call.1} parent=1 // pred_check
      _
    $region59: #{tpu_custom_call.1} parent=1 // pred_check_branch
      %100 = sbr.rel (0) target = $region61
    $region60: #{tpu_custom_call.1} parent=1 // pred_region
      %101 = dma.done [#allocation10], 2048
    $region61: #{tpu_custom_call.1} parent=1 // pred_fallthru
      _
    %v103 = vld [vmem:[%s0] sm:$0x77]
    %v104 = vld [vmem:[%s0 + $0x8] sm:$0x77]
    %v105 = vld [vmem:[#allocation3] sm:$0x3]
    %v106 = vld [vmem:[#allocation3 + $0x2] sm:$0x3]
    %v109 = vlaneseq
    %v110 = vshrl.u32 %v109, 7
    %v111 = vsub.s32 0, %v110
    %v112 = vrot.slane %v105, %v111
    %v113 = vlaneseq
    %v114 = vshrl.u32 %v113, 7
    %v115 = vsub.s32 1, %v114
    %v116 = vrot.slane %v105, %v115
    %v117 = vlaneseq
    %v118 = vshrl.u32 %v117, 7
    %v119 = vsub.s32 0, %v118
    %v120 = vrot.slane %v106, %v119
    %v121 = vlaneseq
    %v122 = vshrl.u32 %v121, 7
    %v123 = vsub.s32 1, %v122
    %v124 = vrot.slane %v106, %v123
    %v125 = vcombine.low %v112, %v116
    %v126 = vcombine.low %v120, %v124
    %v129 = vmul.f32 %v103, %v125
    %v130 = vmul.f32 %v104, %v126
    %v133 = vcombine.high %v129, %v129
    %v134 = vcombine.high %v130, %v130
    %vm137 = vcmask 1042432
    %v138 = vsel %vm137, %v129, 0.0
    %v139 = vsel %vm137, %v133, 0.0
    %v140 = vadd.f32 %v138, %v139
    %141 = vadd.xlane.f32.xlu0 %v140
    %v142 = vpop.xlane.xlu0 %141
    %v143 = vsel %vm137, %v130, 0.0
    %v144 = vsel %vm137, %v134, 0.0
    %v145 = vadd.f32 %v143, %v144
    %146 = vadd.xlane.f32.xlu0 %v145
    %v147 = vpop.xlane.xlu0 %146
    %v148 = vrcp.pop 256.0
    %v149 = vmul.f32 %v142, %v148
    %v150 = vmul.f32 %v147, %v148
    %v151 = vld [vmem:[%s2] sm:$0x77]
    %v152 = vld [vmem:[%s2 + $0x8] sm:$0x77]
    %v153 = vld [vmem:[%s2 + $0x10] sm:$0x77]
    %v154 = vld [vmem:[%s2 + $0x18] sm:$0x77]
    %v159 = vcombine.high %v151, %v151
    %v160 = vcombine.high %v152, %v152
    %v161 = vcombine.high %v153, %v153
    %v162 = vcombine.high %v154, %v154
    %v167 = vmul.f32 %v149, %v151
    %v168 = vmul.f32 %v149, %v159
    %v169 = vmul.f32 %v149, %v152
    %v170 = vmul.f32 %v149, %v160
    %v171 = vmul.f32 %v149, %v153
    %v172 = vmul.f32 %v149, %v161
    %v173 = vmul.f32 %v149, %v154
    %v174 = vmul.f32 %v149, %v162
    %v175 = vmul.f32 %v150, %v151
    %v176 = vmul.f32 %v150, %v159
    %v177 = vmul.f32 %v150, %v152
    %v178 = vmul.f32 %v150, %v160
    %v179 = vmul.f32 %v150, %v153
    %v180 = vmul.f32 %v150, %v161
    %v181 = vmul.f32 %v150, %v154
    %v182 = vmul.f32 %v150, %v162
    %v183 = vsel %vm137, %v167, 0.0
    %v184 = vrot.slane %v183, 4
    %v185 = vadd.f32 %v183, %v184
    %v186 = vrot.slane %v185, 2
    %v187 = vadd.f32 %v185, %v186
    %v188 = vrot.slane %v187, 1
    %v189 = vadd.f32 %v187, %v188
    %v190 = vsel %vm137, %v168, 0.0
    %v191 = vrot.slane %v190, 4
    %v192 = vadd.f32 %v190, %v191
    %v193 = vrot.slane %v192, 2
    %v194 = vadd.f32 %v192, %v193
    %v195 = vrot.slane %v194, 1
    %v196 = vadd.f32 %v194, %v195
    %v197 = vsel %vm137, %v169, 0.0
    %v198 = vrot.slane %v197, 4
    %v199 = vadd.f32 %v197, %v198
    %v200 = vrot.slane %v199, 2
    %v201 = vadd.f32 %v199, %v200
    %v202 = vrot.slane %v201, 1
    %v203 = vadd.f32 %v201, %v202
    %v204 = vsel %vm137, %v170, 0.0
    %v205 = vrot.slane %v204, 4
    %v206 = vadd.f32 %v204, %v205
    %v207 = vrot.slane %v206, 2
    %v208 = vadd.f32 %v206, %v207
    %v209 = vrot.slane %v208, 1
    %v210 = vadd.f32 %v208, %v209
    %v211 = vsel %vm137, %v171, 0.0
    %v212 = vrot.slane %v211, 4
    %v213 = vadd.f32 %v211, %v212
    %v214 = vrot.slane %v213, 2
    %v215 = vadd.f32 %v213, %v214
    %v216 = vrot.slane %v215, 1
    %v217 = vadd.f32 %v215, %v216
    %v218 = vsel %vm137, %v172, 0.0
    %v219 = vrot.slane %v218, 4
    %v220 = vadd.f32 %v218, %v219
    %v221 = vrot.slane %v220, 2
    %v222 = vadd.f32 %v220, %v221
    %v223 = vrot.slane %v222, 1
    %v224 = vadd.f32 %v222, %v223
    %v225 = vsel %vm137, %v173, 0.0
    %v226 = vrot.slane %v225, 4
    %v227 = vadd.f32 %v225, %v226
    %v228 = vrot.slane %v227, 2
    %v229 = vadd.f32 %v227, %v228
    %v230 = vrot.slane %v229, 1
    %v231 = vadd.f32 %v229, %v230
    %v232 = vsel %vm137, %v174, 0.0
    %v233 = vrot.slane %v232, 4
    %v234 = vadd.f32 %v232, %v233
    %v235 = vrot.slane %v234, 2
    %v236 = vadd.f32 %v234, %v235
    %v237 = vrot.slane %v236, 1
    %v238 = vadd.f32 %v236, %v237
    %v239 = vsel %vm137, %v175, 0.0
    %v240 = vrot.slane %v239, 4
    %v241 = vadd.f32 %v239, %v240
    %v242 = vrot.slane %v241, 2
    %v243 = vadd.f32 %v241, %v242
    %v244 = vrot.slane %v243, 1
    %v245 = vadd.f32 %v243, %v244
    %v246 = vsel %vm137, %v176, 0.0
    %v247 = vrot.slane %v246, 4
    %v248 = vadd.f32 %v246, %v247
    %v249 = vrot.slane %v248, 2
    %v250 = vadd.f32 %v248, %v249
    %v251 = vrot.slane %v250, 1
    %v252 = vadd.f32 %v250, %v251
    %v253 = vsel %vm137, %v177, 0.0
    %v254 = vrot.slane %v253, 4
    %v255 = vadd.f32 %v253, %v254
    %v256 = vrot.slane %v255, 2
    %v257 = vadd.f32 %v255, %v256
    %v258 = vrot.slane %v257, 1
    %v259 = vadd.f32 %v257, %v258
    %v260 = vsel %vm137, %v178, 0.0
    %v261 = vrot.slane %v260, 4
    %v262 = vadd.f32 %v260, %v261
    %v263 = vrot.slane %v262, 2
    %v264 = vadd.f32 %v262, %v263
    %v265 = vrot.slane %v264, 1
    %v266 = vadd.f32 %v264, %v265
    %v267 = vsel %vm137, %v179, 0.0
    %v268 = vrot.slane %v267, 4
    %v269 = vadd.f32 %v267, %v268
    %v270 = vrot.slane %v269, 2
    %v271 = vadd.f32 %v269, %v270
    %v272 = vrot.slane %v271, 1
    %v273 = vadd.f32 %v271, %v272
    %v274 = vsel %vm137, %v180, 0.0
    %v275 = vrot.slane %v274, 4
    %v276 = vadd.f32 %v274, %v275
    %v277 = vrot.slane %v276, 2
    %v278 = vadd.f32 %v276, %v277
    %v279 = vrot.slane %v278, 1
    %v280 = vadd.f32 %v278, %v279
    %v281 = vsel %vm137, %v181, 0.0
    %v282 = vrot.slane %v281, 4
    %v283 = vadd.f32 %v281, %v282
    %v284 = vrot.slane %v283, 2
    %v285 = vadd.f32 %v283, %v284
    %v286 = vrot.slane %v285, 1
    %v287 = vadd.f32 %v285, %v286
    %v288 = vsel %vm137, %v182, 0.0
    %v289 = vrot.slane %v288, 4
    %v290 = vadd.f32 %v288, %v289
    %v291 = vrot.slane %v290, 2
    %v292 = vadd.f32 %v290, %v291
    %v293 = vrot.slane %v292, 1
    %v294 = vadd.f32 %v292, %v293
    %v295 = vld [vmem:[#allocation6] sm:$0xff]
    %v297 = vlaneseq
    %v298 = vshrl.u32 %v297, 7
    %v299 = vsub.s32 0, %v298
    %v300 = vrot.slane %v295, %v299
    %v301 = vlaneseq
    %v302 = vshrl.u32 %v301, 7
    %v303 = vsub.s32 1, %v302
    %v304 = vrot.slane %v295, %v303
    %v305 = vlaneseq
    %v306 = vshrl.u32 %v305, 7
    %v307 = vsub.s32 2, %v306
    %v308 = vrot.slane %v295, %v307
    %v309 = vlaneseq
    %v310 = vshrl.u32 %v309, 7
    %v311 = vsub.s32 3, %v310
    %v312 = vrot.slane %v295, %v311
    %v313 = vlaneseq
    %v314 = vshrl.u32 %v313, 7
    %v315 = vsub.s32 4, %v314
    %v316 = vrot.slane %v295, %v315
    %v317 = vlaneseq
    %v318 = vshrl.u32 %v317, 7
    %v319 = vsub.s32 5, %v318
    %v320 = vrot.slane %v295, %v319
    %v321 = vlaneseq
    %v322 = vshrl.u32 %v321, 7
    %v323 = vsub.s32 6, %v322
    %v324 = vrot.slane %v295, %v323
    %v325 = vlaneseq
    %v326 = vshrl.u32 %v325, 7
    %v327 = vsub.s32 7, %v326
    %v328 = vrot.slane %v295, %v327
    %v337 = vadd.f32 %v189, %v300
    %v338 = vadd.f32 %v196, %v304
    %v339 = vadd.f32 %v203, %v308
    %v340 = vadd.f32 %v210, %v312
    %v341 = vadd.f32 %v217, %v316
    %v342 = vadd.f32 %v224, %v320
    %v343 = vadd.f32 %v231, %v324
    %v344 = vadd.f32 %v238, %v328
    %v345 = vadd.f32 %v245, %v300
    %v346 = vadd.f32 %v252, %v304
    %v347 = vadd.f32 %v259, %v308
    %v348 = vadd.f32 %v266, %v312
    %v349 = vadd.f32 %v273, %v316
    %v350 = vadd.f32 %v280, %v320
    %v351 = vadd.f32 %v287, %v324
    %v352 = vadd.f32 %v294, %v328
    %v353 = vpack.c.bf16 %v337, %v337
    %v354 = vpack.c.bf16 %v338, %v338
    %v355 = vpack.c.bf16 %v339, %v339
    %v356 = vpack.c.bf16 %v340, %v340
    %v357 = vpack.c.bf16 %v341, %v341
    %v358 = vpack.c.bf16 %v342, %v342
    %v359 = vpack.c.bf16 %v343, %v343
    %v360 = vpack.c.bf16 %v344, %v344
    %v361 = vpack.c.bf16 %v345, %v345
    %v362 = vpack.c.bf16 %v346, %v346
    %v363 = vpack.c.bf16 %v347, %v347
    %v364 = vpack.c.bf16 %v348, %v348
    %v365 = vpack.c.bf16 %v349, %v349
    %v366 = vpack.c.bf16 %v350, %v350
    %v367 = vpack.c.bf16 %v351, %v351
    %v368 = vpack.c.bf16 %v352, %v352
    %v369 = vld [vmem:[#allocation8] sm:$0xff]
    %v370 = vld [vmem:[#allocation8 + $0x8] sm:$0xf]
    %v371 = vld [vmem:[#allocation8 + $0xc] sm:$0xff]
    %v372 = vld [vmem:[#allocation8 + $0x14] sm:$0xf]
    %v373 = vld [vmem:[#allocation8 + $0x18] sm:$0xff]
    %v374 = vld [vmem:[#allocation8 + $0x20] sm:$0xf]
    %v375 = vld [vmem:[#allocation8 + $0x24] sm:$0xff]
    %v376 = vld [vmem:[#allocation8 + $0x2c] sm:$0xf]
    %v377 = vld [vmem:[#allocation8 + $0x30] sm:$0xff]
    %v378 = vld [vmem:[#allocation8 + $0x38] sm:$0xf]
    %v379 = vld [vmem:[#allocation8 + $0x3c] sm:$0xff]
    %v380 = vld [vmem:[#allocation8 + $0x44] sm:$0xf]
    %v381 = vld [vmem:[#allocation8 + $0x48] sm:$0xff]
    %v382 = vld [vmem:[#allocation8 + $0x50] sm:$0xf]
    %v383 = vld [vmem:[#allocation8 + $0x54] sm:$0xff]
    %v384 = vld [vmem:[#allocation8 + $0x5c] sm:$0xf]
    %v385 = vld [vmem:[#allocation8 + $0x60] sm:$0xff]
    %v386 = vld [vmem:[#allocation8 + $0x68] sm:$0xf]
    %v387 = vld [vmem:[#allocation8 + $0x6c] sm:$0xff]
    %v388 = vld [vmem:[#allocation8 + $0x74] sm:$0xf]
    %v389 = vld [vmem:[#allocation8 + $0x78] sm:$0xff]
    %v390 = vld [vmem:[#allocation8 + $0x80] sm:$0xf]
    %v391 = vld [vmem:[#allocation8 + $0x84] sm:$0xff]
    %v392 = vld [vmem:[#allocation8 + $0x8c] sm:$0xf]
    %v393 = vld [vmem:[#allocation8 + $0x90] sm:$0xff]
    %v394 = vld [vmem:[#allocation8 + $0x98] sm:$0xf]
    %v395 = vld [vmem:[#allocation8 + $0x9c] sm:$0xff]
    %v396 = vld [vmem:[#allocation8 + $0xa4] sm:$0xf]
    %v397 = vld [vmem:[#allocation8 + $0xa8] sm:$0xff]
    %v398 = vld [vmem:[#allocation8 + $0xb0] sm:$0xf]
    %v399 = vld [vmem:[#allocation8 + $0xb4] sm:$0xff]
    %v400 = vld [vmem:[#allocation8 + $0xbc] sm:$0xf]
    %v401 = vld [vmem:[#allocation8 + $0xc0] sm:$0xff]
    %v402 = vld [vmem:[#allocation8 + $0xc8] sm:$0xf]
    %v403 = vld [vmem:[#allocation8 + $0xcc] sm:$0xff]
    %v404 = vld [vmem:[#allocation8 + $0xd4] sm:$0xf]
    %v405 = vld [vmem:[#allocation8 + $0xd8] sm:$0xff]
    %v406 = vld [vmem:[#allocation8 + $0xe0] sm:$0xf]
    %v407 = vld [vmem:[#allocation8 + $0xe4] sm:$0xff]
    %v408 = vld [vmem:[#allocation8 + $0xec] sm:$0xf]
    %v409 = vld [vmem:[#allocation8 + $0xf0] sm:$0xff]
    %v410 = vld [vmem:[#allocation8 + $0xf8] sm:$0xf]
    %v411 = vld [vmem:[#allocation8 + $0xfc] sm:$0xff]
    %v412 = vld [vmem:[#allocation8 + $0x104] sm:$0xf]
    %v413 = vld [vmem:[#allocation8 + $0x108] sm:$0xff]
    %v414 = vld [vmem:[#allocation8 + $0x110] sm:$0xf]
    %v415 = vld [vmem:[#allocation8 + $0x114] sm:$0xff]
    %v416 = vld [vmem:[#allocation8 + $0x11c] sm:$0xf]
    %v417 = vld [vmem:[#allocation8 + $0x120] sm:$0xff]
    %v418 = vld [vmem:[#allocation8 + $0x128] sm:$0xf]
    %v419 = vld [vmem:[#allocation8 + $0x12c] sm:$0xff]
    %v420 = vld [vmem:[#allocation8 + $0x134] sm:$0xf]
    %v421 = vld [vmem:[#allocation8 + $0x138] sm:$0xff]
    %v422 = vld [vmem:[#allocation8 + $0x140] sm:$0xf]
    %v423 = vld [vmem:[#allocation8 + $0x144] sm:$0xff]
    %v424 = vld [vmem:[#allocation8 + $0x14c] sm:$0xf]
    %v425 = vld [vmem:[#allocation8 + $0x150] sm:$0xff]
    %v426 = vld [vmem:[#allocation8 + $0x158] sm:$0xf]
    %v427 = vld [vmem:[#allocation8 + $0x15c] sm:$0xff]
    %v428 = vld [vmem:[#allocation8 + $0x164] sm:$0xf]
    %v429 = vld [vmem:[#allocation8 + $0x168] sm:$0xff]
    %v430 = vld [vmem:[#allocation8 + $0x170] sm:$0xf]
    %v431 = vld [vmem:[#allocation8 + $0x174] sm:$0xff]
    %v432 = vld [vmem:[#allocation8 + $0x17c] sm:$0xf]
    %v433 = vld [vmem:[#allocation8 + $0x180] sm:$0xff]
    %v434 = vld [vmem:[#allocation8 + $0x188] sm:$0xf]
    %v435 = vld [vmem:[#allocation8 + $0x18c] sm:$0xff]
    %v436 = vld [vmem:[#allocation8 + $0x194] sm:$0xf]
    %v437 = vld [vmem:[#allocation8 + $0x198] sm:$0xff]
    %v438 = vld [vmem:[#allocation8 + $0x1a0] sm:$0xf]
    %v439 = vld [vmem:[#allocation8 + $0x1a4] sm:$0xff]
    %v440 = vld [vmem:[#allocation8 + $0x1ac] sm:$0xf]
    %v441 = vld [vmem:[#allocation8 + $0x1b0] sm:$0xff]
    %v442 = vld [vmem:[#allocation8 + $0x1b8] sm:$0xf]
    %v443 = vld [vmem:[#allocation8 + $0x1bc] sm:$0xff]
    %v444 = vld [vmem:[#allocation8 + $0x1c4] sm:$0xf]
    %v445 = vld [vmem:[#allocation8 + $0x1c8] sm:$0xff]
    %v446 = vld [vmem:[#allocation8 + $0x1d0] sm:$0xf]
    %v447 = vld [vmem:[#allocation8 + $0x1d4] sm:$0xff]
    %v448 = vld [vmem:[#allocation8 + $0x1dc] sm:$0xf]
    %v449 = vld [vmem:[#allocation8 + $0x1e0] sm:$0xff]
    %v450 = vld [vmem:[#allocation8 + $0x1e8] sm:$0xf]
    %v451 = vld [vmem:[#allocation8 + $0x1ec] sm:$0xff]
    %v452 = vld [vmem:[#allocation8 + $0x1f4] sm:$0xf]
    %v453 = vld [vmem:[#allocation8 + $0x1f8] sm:$0xff]
    %v454 = vld [vmem:[#allocation8 + $0x200] sm:$0xf]
    %v455 = vld [vmem:[#allocation8 + $0x204] sm:$0xff]
    %v456 = vld [vmem:[#allocation8 + $0x20c] sm:$0xf]
    %v457 = vld [vmem:[#allocation8 + $0x210] sm:$0xff]
    %v458 = vld [vmem:[#allocation8 + $0x218] sm:$0xf]
    %v459 = vld [vmem:[#allocation8 + $0x21c] sm:$0xff]
    %v460 = vld [vmem:[#allocation8 + $0x224] sm:$0xf]
    %v461 = vld [vmem:[#allocation8 + $0x228] sm:$0xff]
    %v462 = vld [vmem:[#allocation8 + $0x230] sm:$0xf]
    %v463 = vld [vmem:[#allocation8 + $0x234] sm:$0xff]
    %v464 = vld [vmem:[#allocation8 + $0x23c] sm:$0xf]
    %v465 = vld [vmem:[#allocation8 + $0x240] sm:$0xff]
    %v466 = vld [vmem:[#allocation8 + $0x248] sm:$0xf]
    %v467 = vld [vmem:[#allocation8 + $0x24c] sm:$0xff]
    %v468 = vld [vmem:[#allocation8 + $0x254] sm:$0xf]
    %v469 = vld [vmem:[#allocation8 + $0x258] sm:$0xff]
    %v470 = vld [vmem:[#allocation8 + $0x260] sm:$0xf]
    %v471 = vld [vmem:[#allocation8 + $0x264] sm:$0xff]
    %v472 = vld [vmem:[#allocation8 + $0x26c] sm:$0xf]
    %v473 = vld [vmem:[#allocation8 + $0x270] sm:$0xff]
    %v474 = vld [vmem:[#allocation8 + $0x278] sm:$0xf]
    %v475 = vld [vmem:[#allocation8 + $0x27c] sm:$0xff]
    %v476 = vld [vmem:[#allocation8 + $0x284] sm:$0xf]
    %v477 = vld [vmem:[#allocation8 + $0x288] sm:$0xff]
    %v478 = vld [vmem:[#allocation8 + $0x290] sm:$0xf]
    %v479 = vld [vmem:[#allocation8 + $0x294] sm:$0xff]
    %v480 = vld [vmem:[#allocation8 + $0x29c] sm:$0xf]
    %v481 = vld [vmem:[#allocation8 + $0x2a0] sm:$0xff]
    %v482 = vld [vmem:[#allocation8 + $0x2a8] sm:$0xf]
    %v483 = vld [vmem:[#allocation8 + $0x2ac] sm:$0xff]
    %v484 = vld [vmem:[#allocation8 + $0x2b4] sm:$0xf]
    %v485 = vld [vmem:[#allocation8 + $0x2b8] sm:$0xff]
    %v486 = vld [vmem:[#allocation8 + $0x2c0] sm:$0xf]
    %v487 = vld [vmem:[#allocation8 + $0x2c4] sm:$0xff]
    %v488 = vld [vmem:[#allocation8 + $0x2cc] sm:$0xf]
    %v489 = vld [vmem:[#allocation8 + $0x2d0] sm:$0xff]
    %v490 = vld [vmem:[#allocation8 + $0x2d8] sm:$0xf]
    %v491 = vld [vmem:[#allocation8 + $0x2dc] sm:$0xff]
    %v492 = vld [vmem:[#allocation8 + $0x2e4] sm:$0xf]
    %v493 = vld [vmem:[#allocation8 + $0x2e8] sm:$0xff]
    %v494 = vld [vmem:[#allocation8 + $0x2f0] sm:$0xf]
    %v495 = vld [vmem:[#allocation8 + $0x2f4] sm:$0xff]
    %v496 = vld [vmem:[#allocation8 + $0x2fc] sm:$0xf]
    %v497 = vld [vmem:[#allocation8 + $0x300] sm:$0xff]
    %v498 = vld [vmem:[#allocation8 + $0x308] sm:$0xf]
    %v499 = vld [vmem:[#allocation8 + $0x30c] sm:$0xff]
    %v500 = vld [vmem:[#allocation8 + $0x314] sm:$0xf]
    %v501 = vld [vmem:[#allocation8 + $0x318] sm:$0xff]
    %v502 = vld [vmem:[#allocation8 + $0x320] sm:$0xf]
    %v503 = vld [vmem:[#allocation8 + $0x324] sm:$0xff]
    %v504 = vld [vmem:[#allocation8 + $0x32c] sm:$0xf]
    %v505 = vld [vmem:[#allocation8 + $0x330] sm:$0xff]
    %v506 = vld [vmem:[#allocation8 + $0x338] sm:$0xf]
    %v507 = vld [vmem:[#allocation8 + $0x33c] sm:$0xff]
    %v508 = vld [vmem:[#allocation8 + $0x344] sm:$0xf]
    %v509 = vld [vmem:[#allocation8 + $0x348] sm:$0xff]
    %v510 = vld [vmem:[#allocation8 + $0x350] sm:$0xf]
    %v511 = vld [vmem:[#allocation8 + $0x354] sm:$0xff]
    %v512 = vld [vmem:[#allocation8 + $0x35c] sm:$0xf]
    %v513 = vld [vmem:[#allocation8 + $0x360] sm:$0xff]
    %v514 = vld [vmem:[#allocation8 + $0x368] sm:$0xf]
    %v515 = vld [vmem:[#allocation8 + $0x36c] sm:$0xff]
    %v516 = vld [vmem:[#allocation8 + $0x374] sm:$0xf]
    %v517 = vld [vmem:[#allocation8 + $0x378] sm:$0xff]
    %v518 = vld [vmem:[#allocation8 + $0x380] sm:$0xf]
    %v519 = vld [vmem:[#allocation8 + $0x384] sm:$0xff]
    %v520 = vld [vmem:[#allocation8 + $0x38c] sm:$0xf]
    %v521 = vld [vmem:[#allocation8 + $0x390] sm:$0xff]
    %v522 = vld [vmem:[#allocation8 + $0x398] sm:$0xf]
    %v523 = vld [vmem:[#allocation8 + $0x39c] sm:$0xff]
    %v524 = vld [vmem:[#allocation8 + $0x3a4] sm:$0xf]
    %v525 = vld [vmem:[#allocation8 + $0x3a8] sm:$0xff]
    %v526 = vld [vmem:[#allocation8 + $0x3b0] sm:$0xf]
    %v527 = vld [vmem:[#allocation8 + $0x3b4] sm:$0xff]
    %v528 = vld [vmem:[#allocation8 + $0x3bc] sm:$0xf]
    %v529 = vld [vmem:[#allocation8 + $0x3c0] sm:$0xff]
    %v530 = vld [vmem:[#allocation8 + $0x3c8] sm:$0xf]
    %v531 = vld [vmem:[#allocation8 + $0x3cc] sm:$0xff]
    %v532 = vld [vmem:[#allocation8 + $0x3d4] sm:$0xf]
    %v533 = vld [vmem:[#allocation8 + $0x3d8] sm:$0xff]
    %v534 = vld [vmem:[#allocation8 + $0x3e0] sm:$0xf]
    %v535 = vld [vmem:[#allocation8 + $0x3e4] sm:$0xff]
    %v536 = vld [vmem:[#allocation8 + $0x3ec] sm:$0xf]
    %v537 = vld [vmem:[#allocation8 + $0x3f0] sm:$0xff]
    %v538 = vld [vmem:[#allocation8 + $0x3f8] sm:$0xf]
    %v539 = vld [vmem:[#allocation8 + $0x3fc] sm:$0xff]
    %v540 = vld [vmem:[#allocation8 + $0x404] sm:$0xf]
    %v541 = vld [vmem:[#allocation8 + $0x408] sm:$0xff]
    %v542 = vld [vmem:[#allocation8 + $0x410] sm:$0xf]
    %v543 = vld [vmem:[#allocation8 + $0x414] sm:$0xff]
    %v544 = vld [vmem:[#allocation8 + $0x41c] sm:$0xf]
    %v545 = vld [vmem:[#allocation8 + $0x420] sm:$0xff]
    %v546 = vld [vmem:[#allocation8 + $0x428] sm:$0xf]
    %v547 = vld [vmem:[#allocation8 + $0x42c] sm:$0xff]
    %v548 = vld [vmem:[#allocation8 + $0x434] sm:$0xf]
    %v549 = vld [vmem:[#allocation8 + $0x438] sm:$0xff]
    %v550 = vld [vmem:[#allocation8 + $0x440] sm:$0xf]
    %v551 = vld [vmem:[#allocation8 + $0x444] sm:$0xff]
    %v552 = vld [vmem:[#allocation8 + $0x44c] sm:$0xf]
    %v553 = vld [vmem:[#allocation8 + $0x450] sm:$0xff]
    %v554 = vld [vmem:[#allocation8 + $0x458] sm:$0xf]
    %v555 = vld [vmem:[#allocation8 + $0x45c] sm:$0xff]
    %v556 = vld [vmem:[#allocation8 + $0x464] sm:$0xf]
    %v557 = vld [vmem:[#allocation8 + $0x468] sm:$0xff]
    %v558 = vld [vmem:[#allocation8 + $0x470] sm:$0xf]
    %v559 = vld [vmem:[#allocation8 + $0x474] sm:$0xff]
    %v560 = vld [vmem:[#allocation8 + $0x47c] sm:$0xf]
    %v561 = vld [vmem:[#allocation8 + $0x480] sm:$0xff]
    %v562 = vld [vmem:[#allocation8 + $0x488] sm:$0xf]
    %v563 = vld [vmem:[#allocation8 + $0x48c] sm:$0xff]
    %v564 = vld [vmem:[#allocation8 + $0x494] sm:$0xf]
    %v565 = vld [vmem:[#allocation8 + $0x498] sm:$0xff]
    %v566 = vld [vmem:[#allocation8 + $0x4a0] sm:$0xf]
    %v567 = vld [vmem:[#allocation8 + $0x4a4] sm:$0xff]
    %v568 = vld [vmem:[#allocation8 + $0x4ac] sm:$0xf]
    %v569 = vld [vmem:[#allocation8 + $0x4b0] sm:$0xff]
    %v570 = vld [vmem:[#allocation8 + $0x4b8] sm:$0xf]
    %v571 = vld [vmem:[#allocation8 + $0x4bc] sm:$0xff]
    %v572 = vld [vmem:[#allocation8 + $0x4c4] sm:$0xf]
    %v573 = vld [vmem:[#allocation8 + $0x4c8] sm:$0xff]
    %v574 = vld [vmem:[#allocation8 + $0x4d0] sm:$0xf]
    %v575 = vld [vmem:[#allocation8 + $0x4d4] sm:$0xff]
    %v576 = vld [vmem:[#allocation8 + $0x4dc] sm:$0xf]
    %v577 = vld [vmem:[#allocation8 + $0x4e0] sm:$0xff]
    %v578 = vld [vmem:[#allocation8 + $0x4e8] sm:$0xf]
    %v579 = vld [vmem:[#allocation8 + $0x4ec] sm:$0xff]
    %v580 = vld [vmem:[#allocation8 + $0x4f4] sm:$0xf]
    %v581 = vld [vmem:[#allocation8 + $0x4f8] sm:$0xff]
    %v582 = vld [vmem:[#allocation8 + $0x500] sm:$0xf]
    %v583 = vld [vmem:[#allocation8 + $0x504] sm:$0xff]
    %v584 = vld [vmem:[#allocation8 + $0x50c] sm:$0xf]
    %v585 = vld [vmem:[#allocation8 + $0x510] sm:$0xff]
    %v586 = vld [vmem:[#allocation8 + $0x518] sm:$0xf]
    %v587 = vld [vmem:[#allocation8 + $0x51c] sm:$0xff]
    %v588 = vld [vmem:[#allocation8 + $0x524] sm:$0xf]
    %v589 = vld [vmem:[#allocation8 + $0x528] sm:$0xff]
    %v590 = vld [vmem:[#allocation8 + $0x530] sm:$0xf]
    %v591 = vld [vmem:[#allocation8 + $0x534] sm:$0xff]
    %v592 = vld [vmem:[#allocation8 + $0x53c] sm:$0xf]
    %v593 = vld [vmem:[#allocation8 + $0x540] sm:$0xff]
    %v594 = vld [vmem:[#allocation8 + $0x548] sm:$0xf]
    %v595 = vld [vmem:[#allocation8 + $0x54c] sm:$0xff]
    %v596 = vld [vmem:[#allocation8 + $0x554] sm:$0xf]
    %v597 = vld [vmem:[#allocation8 + $0x558] sm:$0xff]
    %v598 = vld [vmem:[#allocation8 + $0x560] sm:$0xf]
    %v599 = vld [vmem:[#allocation8 + $0x564] sm:$0xff]
    %v600 = vld [vmem:[#allocation8 + $0x56c] sm:$0xf]
    %v601 = vld [vmem:[#allocation8 + $0x570] sm:$0xff]
    %v602 = vld [vmem:[#allocation8 + $0x578] sm:$0xf]
    %v603 = vld [vmem:[#allocation8 + $0x57c] sm:$0xff]
    %v604 = vld [vmem:[#allocation8 + $0x584] sm:$0xf]
    %v605 = vld [vmem:[#allocation8 + $0x588] sm:$0xff]
    %v606 = vld [vmem:[#allocation8 + $0x590] sm:$0xf]
    %v607 = vld [vmem:[#allocation8 + $0x594] sm:$0xff]
    %v608 = vld [vmem:[#allocation8 + $0x59c] sm:$0xf]
    %v609 = vld [vmem:[#allocation8 + $0x5a0] sm:$0xff]
    %v610 = vld [vmem:[#allocation8 + $0x5a8] sm:$0xf]
    %v611 = vld [vmem:[#allocation8 + $0x5ac] sm:$0xff]
    %v612 = vld [vmem:[#allocation8 + $0x5b4] sm:$0xf]
    %v613 = vld [vmem:[#allocation8 + $0x5b8] sm:$0xff]
    %v614 = vld [vmem:[#allocation8 + $0x5c0] sm:$0xf]
    %v615 = vld [vmem:[#allocation8 + $0x5c4] sm:$0xff]
    %v616 = vld [vmem:[#allocation8 + $0x5cc] sm:$0xf]
    %v617 = vld [vmem:[#allocation8 + $0x5d0] sm:$0xff]
    %v618 = vld [vmem:[#allocation8 + $0x5d8] sm:$0xf]
    %v619 = vld [vmem:[#allocation8 + $0x5dc] sm:$0xff]
    %v620 = vld [vmem:[#allocation8 + $0x5e4] sm:$0xf]
    %v621 = vld [vmem:[#allocation8 + $0x5e8] sm:$0xff]
    %v622 = vld [vmem:[#allocation8 + $0x5f0] sm:$0xf]
    %v623 = vld [vmem:[#allocation8 + $0x5f4] sm:$0xff]
    %v624 = vld [vmem:[#allocation8 + $0x5fc] sm:$0xf]
    %v625 = vld [vmem:[%s5] sm:$0x7]
    %v627 = vlaneseq
    %v628 = vshrl.u32 %v627, 7
    %v629 = vsub.s32 0, %v628
    %v630 = vrot.slane %v625, %v629
    %v631 = vlaneseq
    %v632 = vshrl.u32 %v631, 7
    %v633 = vsub.s32 1, %v632
    %v634 = vrot.slane %v625, %v633
    %v635 = vlaneseq
    %v636 = vshrl.u32 %v635, 7
    %v637 = vsub.s32 2, %v636
    %v638 = vrot.slane %v625, %v637
    %v658 = vunpack.c.l.b16 %v353
    %v659 = vunpack.c.l.b16 %v354
    %v660 = vunpack.c.l.b16 %v355
    %v661 = vunpack.c.l.b16 %v356
    %v662 = vunpack.c.l.b16 %v357
    %v663 = vunpack.c.l.b16 %v358
    %v664 = vunpack.c.l.b16 %v359
    %v665 = vunpack.c.l.b16 %v360
    %v666 = vunpack.c.l.b16 %v361
    %v667 = vunpack.c.l.b16 %v362
    %v668 = vunpack.c.l.b16 %v363
    %v669 = vunpack.c.l.b16 %v364
    %v670 = vunpack.c.l.b16 %v365
    %v671 = vunpack.c.l.b16 %v366
    %v672 = vunpack.c.l.b16 %v367
    %v673 = vunpack.c.l.b16 %v368
    %v674 = vrot.slane %v666, 7
    %vm675 = vcmask 1041409
    %v676 = vsel %vm675, %v674, %v658
    %v677 = vrot.slane %v667, 7
    %v678 = vsel %vm675, %v677, %v659
    %v679 = vrot.slane %v668, 7
    %v680 = vsel %vm675, %v679, %v660
    %v681 = vrot.slane %v669, 7
    %v682 = vsel %vm675, %v681, %v661
    %v683 = vrot.slane %v670, 7
    %v684 = vsel %vm675, %v683, %v662
    %v685 = vrot.slane %v671, 7
    %v686 = vsel %vm675, %v685, %v663
    %v687 = vrot.slane %v672, 7
    %v688 = vsel %vm675, %v687, %v664
    %v689 = vrot.slane %v673, 7
    %v690 = vsel %vm675, %v689, %v665
    %v691 = vpack.c.b16 %v676, %v676
    %v692 = vpack.c.b16 %v678, %v678
    %v693 = vpack.c.b16 %v680, %v680
    %v694 = vpack.c.b16 %v682, %v682
    %v695 = vpack.c.b16 %v684, %v684
    %v696 = vpack.c.b16 %v686, %v686
    %v697 = vpack.c.b16 %v688, %v688
    %v698 = vpack.c.b16 %v690, %v690
    %v963 = vunpack.c.l.b16 %v369
    %v964 = vunpack.c.h.b16 %v369
    %v965 = vunpack.c.l.b16 %v370
    %v966 = vunpack.c.l.b16 %v371
    %v967 = vunpack.c.h.b16 %v371
    %v968 = vunpack.c.l.b16 %v372
    %v969 = vunpack.c.l.b16 %v373
    %v970 = vunpack.c.h.b16 %v373
    %v971 = vunpack.c.l.b16 %v374
    %v972 = vunpack.c.l.b16 %v375
    %v973 = vunpack.c.h.b16 %v375
    %v974 = vunpack.c.l.b16 %v376
    %v975 = vunpack.c.l.b16 %v377
    %v976 = vunpack.c.h.b16 %v377
    %v977 = vunpack.c.l.b16 %v378
    %v978 = vunpack.c.l.b16 %v379
    %v979 = vunpack.c.h.b16 %v379
    %v980 = vunpack.c.l.b16 %v380
    %v981 = vunpack.c.l.b16 %v381
    %v982 = vunpack.c.h.b16 %v381
    %v983 = vunpack.c.l.b16 %v382
    %v984 = vunpack.c.l.b16 %v383
    %v985 = vunpack.c.h.b16 %v383
    %v986 = vunpack.c.l.b16 %v384
    %v987 = vunpack.c.l.b16 %v385
    %v988 = vunpack.c.h.b16 %v385
    %v989 = vunpack.c.l.b16 %v386
    %v990 = vunpack.c.l.b16 %v387
    %v991 = vunpack.c.h.b16 %v387
    %v992 = vunpack.c.l.b16 %v388
    %v993 = vunpack.c.l.b16 %v389
    %v994 = vunpack.c.h.b16 %v389
    %v995 = vunpack.c.l.b16 %v390
    %v996 = vunpack.c.l.b16 %v391
    %v997 = vunpack.c.h.b16 %v391
    %v998 = vunpack.c.l.b16 %v392
    %v999 = vunpack.c.l.b16 %v393
    %v1000 = vunpack.c.h.b16 %v393
    %v1001 = vunpack.c.l.b16 %v394
    %v1002 = vunpack.c.l.b16 %v395
    %v1003 = vunpack.c.h.b16 %v395
    %v1004 = vunpack.c.l.b16 %v396
    %v1005 = vunpack.c.l.b16 %v397
    %v1006 = vunpack.c.h.b16 %v397
    %v1007 = vunpack.c.l.b16 %v398
    %v1008 = vunpack.c.l.b16 %v399
    %v1009 = vunpack.c.h.b16 %v399
    %v1010 = vunpack.c.l.b16 %v400
    %v1011 = vunpack.c.l.b16 %v401
    %v1012 = vunpack.c.h.b16 %v401
    %v1013 = vunpack.c.l.b16 %v402
    %v1014 = vunpack.c.l.b16 %v403
    %v1015 = vunpack.c.h.b16 %v403
    %v1016 = vunpack.c.l.b16 %v404
    %v1017 = vunpack.c.l.b16 %v405
    %v1018 = vunpack.c.h.b16 %v405
    %v1019 = vunpack.c.l.b16 %v406
    %v1020 = vunpack.c.l.b16 %v407
    %v1021 = vunpack.c.h.b16 %v407
    %v1022 = vunpack.c.l.b16 %v408
    %v1023 = vunpack.c.l.b16 %v409
    %v1024 = vunpack.c.h.b16 %v409
    %v1025 = vunpack.c.l.b16 %v410
    %v1026 = vunpack.c.l.b16 %v411
    %v1027 = vunpack.c.h.b16 %v411
    %v1028 = vunpack.c.l.b16 %v412
    %v1029 = vunpack.c.l.b16 %v413
    %v1030 = vunpack.c.h.b16 %v413
    %v1031 = vunpack.c.l.b16 %v414
    %v1032 = vunpack.c.l.b16 %v415
    %v1033 = vunpack.c.h.b16 %v415
    %v1034 = vunpack.c.l.b16 %v416
    %v1035 = vunpack.c.l.b16 %v417
    %v1036 = vunpack.c.h.b16 %v417
    %v1037 = vunpack.c.l.b16 %v418
    %v1038 = vunpack.c.l.b16 %v419
    %v1039 = vunpack.c.h.b16 %v419
    %v1040 = vunpack.c.l.b16 %v420
    %v1041 = vunpack.c.l.b16 %v421
    %v1042 = vunpack.c.h.b16 %v421
    %v1043 = vunpack.c.l.b16 %v422
    %v1044 = vunpack.c.l.b16 %v423
    %v1045 = vunpack.c.h.b16 %v423
    %v1046 = vunpack.c.l.b16 %v424
    %v1047 = vunpack.c.l.b16 %v425
    %v1048 = vunpack.c.h.b16 %v425
    %v1049 = vunpack.c.l.b16 %v426
    %v1050 = vunpack.c.l.b16 %v427
    %v1051 = vunpack.c.h.b16 %v427
    %v1052 = vunpack.c.l.b16 %v428
    %v1053 = vunpack.c.l.b16 %v429
    %v1054 = vunpack.c.h.b16 %v429
    %v1055 = vunpack.c.l.b16 %v430
    %v1056 = vunpack.c.l.b16 %v431
    %v1057 = vunpack.c.h.b16 %v431
    %v1058 = vunpack.c.l.b16 %v432
    %v1059 = vunpack.c.l.b16 %v433
    %v1060 = vunpack.c.h.b16 %v433
    %v1061 = vunpack.c.l.b16 %v434
    %v1062 = vunpack.c.l.b16 %v435
    %v1063 = vunpack.c.h.b16 %v435
    %v1064 = vunpack.c.l.b16 %v436
    %v1065 = vunpack.c.l.b16 %v437
    %v1066 = vunpack.c.h.b16 %v437
    %v1067 = vunpack.c.l.b16 %v438
    %v1068 = vunpack.c.l.b16 %v439
    %v1069 = vunpack.c.h.b16 %v439
    %v1070 = vunpack.c.l.b16 %v440
    %v1071 = vunpack.c.l.b16 %v441
    %v1072 = vunpack.c.h.b16 %v441
    %v1073 = vunpack.c.l.b16 %v442
    %v1074 = vunpack.c.l.b16 %v443
    %v1075 = vunpack.c.h.b16 %v443
    %v1076 = vunpack.c.l.b16 %v444
    %v1077 = vunpack.c.l.b16 %v445
    %v1078 = vunpack.c.h.b16 %v445
    %v1079 = vunpack.c.l.b16 %v446
    %v1080 = vunpack.c.l.b16 %v447
    %v1081 = vunpack.c.h.b16 %v447
    %v1082 = vunpack.c.l.b16 %v448
    %v1083 = vunpack.c.l.b16 %v449
    %v1084 = vunpack.c.h.b16 %v449
    %v1085 = vunpack.c.l.b16 %v450
    %v1086 = vunpack.c.l.b16 %v451
    %v1087 = vunpack.c.h.b16 %v451
    %v1088 = vunpack.c.l.b16 %v452
    %v1089 = vunpack.c.l.b16 %v453
    %v1090 = vunpack.c.h.b16 %v453
    %v1091 = vunpack.c.l.b16 %v454
    %v1092 = vunpack.c.l.b16 %v455
    %v1093 = vunpack.c.h.b16 %v455
    %v1094 = vunpack.c.l.b16 %v456
    %v1095 = vunpack.c.l.b16 %v457
    %v1096 = vunpack.c.h.b16 %v457
    %v1097 = vunpack.c.l.b16 %v458
    %v1098 = vunpack.c.l.b16 %v459
    %v1099 = vunpack.c.h.b16 %v459
    %v1100 = vunpack.c.l.b16 %v460
    %v1101 = vunpack.c.l.b16 %v461
    %v1102 = vunpack.c.h.b16 %v461
    %v1103 = vunpack.c.l.b16 %v462
    %v1104 = vunpack.c.l.b16 %v463
    %v1105 = vunpack.c.h.b16 %v463
    %v1106 = vunpack.c.l.b16 %v464
    %v1107 = vunpack.c.l.b16 %v465
    %v1108 = vunpack.c.h.b16 %v465
    %v1109 = vunpack.c.l.b16 %v466
    %v1110 = vunpack.c.l.b16 %v467
    %v1111 = vunpack.c.h.b16 %v467
    %v1112 = vunpack.c.l.b16 %v468
    %v1113 = vunpack.c.l.b16 %v469
    %v1114 = vunpack.c.h.b16 %v469
    %v1115 = vunpack.c.l.b16 %v470
    %v1116 = vunpack.c.l.b16 %v471
    %v1117 = vunpack.c.h.b16 %v471
    %v1118 = vunpack.c.l.b16 %v472
    %v1119 = vunpack.c.l.b16 %v473
    %v1120 = vunpack.c.h.b16 %v473
    %v1121 = vunpack.c.l.b16 %v474
    %v1122 = vunpack.c.l.b16 %v475
    %v1123 = vunpack.c.h.b16 %v475
    %v1124 = vunpack.c.l.b16 %v476
    %v1125 = vunpack.c.l.b16 %v477
    %v1126 = vunpack.c.h.b16 %v477
    %v1127 = vunpack.c.l.b16 %v478
    %v1128 = vunpack.c.l.b16 %v479
    %v1129 = vunpack.c.h.b16 %v479
    %v1130 = vunpack.c.l.b16 %v480
    %v1131 = vunpack.c.l.b16 %v481
    %v1132 = vunpack.c.h.b16 %v481
    %v1133 = vunpack.c.l.b16 %v482
    %v1134 = vunpack.c.l.b16 %v483
    %v1135 = vunpack.c.h.b16 %v483
    %v1136 = vunpack.c.l.b16 %v484
    %v1137 = vunpack.c.l.b16 %v485
    %v1138 = vunpack.c.h.b16 %v485
    %v1139 = vunpack.c.l.b16 %v486
    %v1140 = vunpack.c.l.b16 %v487
    %v1141 = vunpack.c.h.b16 %v487
    %v1142 = vunpack.c.l.b16 %v488
    %v1143 = vunpack.c.l.b16 %v489
    %v1144 = vunpack.c.h.b16 %v489
    %v1145 = vunpack.c.l.b16 %v490
    %v1146 = vunpack.c.l.b16 %v491
    %v1147 = vunpack.c.h.b16 %v491
    %v1148 = vunpack.c.l.b16 %v492
    %v1149 = vunpack.c.l.b16 %v493
    %v1150 = vunpack.c.h.b16 %v493
    %v1151 = vunpack.c.l.b16 %v494
    %v1152 = vunpack.c.l.b16 %v495
    %v1153 = vunpack.c.h.b16 %v495
    %v1154 = vunpack.c.l.b16 %v496
    %v1155 = vunpack.c.l.b16 %v497
    %v1156 = vunpack.c.h.b16 %v497
    %v1157 = vunpack.c.l.b16 %v498
    %v1158 = vunpack.c.l.b16 %v499
    %v1159 = vunpack.c.h.b16 %v499
    %v1160 = vunpack.c.l.b16 %v500
    %v1161 = vunpack.c.l.b16 %v501
    %v1162 = vunpack.c.h.b16 %v501
    %v1163 = vunpack.c.l.b16 %v502
    %v1164 = vunpack.c.l.b16 %v503
    %v1165 = vunpack.c.h.b16 %v503
    %v1166 = vunpack.c.l.b16 %v504
    %v1167 = vunpack.c.l.b16 %v505
    %v1168 = vunpack.c.h.b16 %v505
    %v1169 = vunpack.c.l.b16 %v506
    %v1170 = vunpack.c.l.b16 %v507
    %v1171 = vunpack.c.h.b16 %v507
    %v1172 = vunpack.c.l.b16 %v508
    %v1173 = vunpack.c.l.b16 %v509
    %v1174 = vunpack.c.h.b16 %v509
    %v1175 = vunpack.c.l.b16 %v510
    %v1176 = vunpack.c.l.b16 %v511
    %v1177 = vunpack.c.h.b16 %v511
    %v1178 = vunpack.c.l.b16 %v512
    %v1179 = vunpack.c.l.b16 %v513
    %v1180 = vunpack.c.h.b16 %v513
    %v1181 = vunpack.c.l.b16 %v514
    %v1182 = vunpack.c.l.b16 %v515
    %v1183 = vunpack.c.h.b16 %v515
    %v1184 = vunpack.c.l.b16 %v516
    %v1185 = vunpack.c.l.b16 %v517
    %v1186 = vunpack.c.h.b16 %v517
    %v1187 = vunpack.c.l.b16 %v518
    %v1188 = vunpack.c.l.b16 %v519
    %v1189 = vunpack.c.h.b16 %v519
    %v1190 = vunpack.c.l.b16 %v520
    %v1191 = vunpack.c.l.b16 %v521
    %v1192 = vunpack.c.h.b16 %v521
    %v1193 = vunpack.c.l.b16 %v522
    %v1194 = vunpack.c.l.b16 %v523
    %v1195 = vunpack.c.h.b16 %v523
    %v1196 = vunpack.c.l.b16 %v524
    %v1197 = vunpack.c.l.b16 %v525
    %v1198 = vunpack.c.h.b16 %v525
    %v1199 = vunpack.c.l.b16 %v526
    %v1200 = vunpack.c.l.b16 %v527
    %v1201 = vunpack.c.h.b16 %v527
    %v1202 = vunpack.c.l.b16 %v528
    %v1203 = vunpack.c.l.b16 %v529
    %v1204 = vunpack.c.h.b16 %v529
    %v1205 = vunpack.c.l.b16 %v530
    %v1206 = vunpack.c.l.b16 %v531
    %v1207 = vunpack.c.h.b16 %v531
    %v1208 = vunpack.c.l.b16 %v532
    %v1209 = vunpack.c.l.b16 %v533
    %v1210 = vunpack.c.h.b16 %v533
    %v1211 = vunpack.c.l.b16 %v534
    %v1212 = vunpack.c.l.b16 %v535
    %v1213 = vunpack.c.h.b16 %v535
    %v1214 = vunpack.c.l.b16 %v536
    %v1215 = vunpack.c.l.b16 %v537
    %v1216 = vunpack.c.h.b16 %v537
    %v1217 = vunpack.c.l.b16 %v538
    %v1218 = vunpack.c.l.b16 %v539
    %v1219 = vunpack.c.h.b16 %v539
    %v1220 = vunpack.c.l.b16 %v540
    %v1221 = vunpack.c.l.b16 %v541
    %v1222 = vunpack.c.h.b16 %v541
    %v1223 = vunpack.c.l.b16 %v542
    %v1224 = vunpack.c.l.b16 %v543
    %v1225 = vunpack.c.h.b16 %v543
    %v1226 = vunpack.c.l.b16 %v544
    %v1227 = vunpack.c.l.b16 %v545
    %v1228 = vunpack.c.h.b16 %v545
    %v1229 = vunpack.c.l.b16 %v546
    %v1230 = vunpack.c.l.b16 %v547
    %v1231 = vunpack.c.h.b16 %v547
    %v1232 = vunpack.c.l.b16 %v548
    %v1233 = vunpack.c.l.b16 %v549
    %v1234 = vunpack.c.h.b16 %v549
    %v1235 = vunpack.c.l.b16 %v550
    %v1236 = vunpack.c.l.b16 %v551
    %v1237 = vunpack.c.h.b16 %v551
    %v1238 = vunpack.c.l.b16 %v552
    %v1239 = vunpack.c.l.b16 %v553
    %v1240 = vunpack.c.h.b16 %v553
    %v1241 = vunpack.c.l.b16 %v554
    %v1242 = vunpack.c.l.b16 %v555
    %v1243 = vunpack.c.h.b16 %v555
    %v1244 = vunpack.c.l.b16 %v556
    %v1245 = vunpack.c.l.b16 %v557
    %v1246 = vunpack.c.h.b16 %v557
    %v1247 = vunpack.c.l.b16 %v558
    %v1248 = vunpack.c.l.b16 %v559
    %v1249 = vunpack.c.h.b16 %v559
    %v1250 = vunpack.c.l.b16 %v560
    %v1251 = vunpack.c.l.b16 %v561
    %v1252 = vunpack.c.h.b16 %v561
    %v1253 = vunpack.c.l.b16 %v562
    %v1254 = vunpack.c.l.b16 %v563
    %v1255 = vunpack.c.h.b16 %v563
    %v1256 = vunpack.c.l.b16 %v564
    %v1257 = vunpack.c.l.b16 %v565
    %v1258 = vunpack.c.h.b16 %v565
    %v1259 = vunpack.c.l.b16 %v566
    %v1260 = vunpack.c.l.b16 %v567
    %v1261 = vunpack.c.h.b16 %v567
    %v1262 = vunpack.c.l.b16 %v568
    %v1263 = vunpack.c.l.b16 %v569
    %v1264 = vunpack.c.h.b16 %v569
    %v1265 = vunpack.c.l.b16 %v570
    %v1266 = vunpack.c.l.b16 %v571
    %v1267 = vunpack.c.h.b16 %v571
    %v1268 = vunpack.c.l.b16 %v572
    %v1269 = vunpack.c.l.b16 %v573
    %v1270 = vunpack.c.h.b16 %v573
    %v1271 = vunpack.c.l.b16 %v574
    %v1272 = vunpack.c.l.b16 %v575
    %v1273 = vunpack.c.h.b16 %v575
    %v1274 = vunpack.c.l.b16 %v576
    %v1275 = vunpack.c.l.b16 %v577
    %v1276 = vunpack.c.h.b16 %v577
    %v1277 = vunpack.c.l.b16 %v578
    %v1278 = vunpack.c.l.b16 %v579
    %v1279 = vunpack.c.h.b16 %v579
    %v1280 = vunpack.c.l.b16 %v580
    %v1281 = vunpack.c.l.b16 %v581
    %v1282 = vunpack.c.h.b16 %v581
    %v1283 = vunpack.c.l.b16 %v582
    %v1284 = vunpack.c.l.b16 %v583
    %v1285 = vunpack.c.h.b16 %v583
    %v1286 = vunpack.c.l.b16 %v584
    %v1287 = vunpack.c.l.b16 %v585
    %v1288 = vunpack.c.h.b16 %v585
    %v1289 = vunpack.c.l.b16 %v586
    %v1290 = vunpack.c.l.b16 %v587
    %v1291 = vunpack.c.h.b16 %v587
    %v1292 = vunpack.c.l.b16 %v588
    %v1293 = vunpack.c.l.b16 %v589
    %v1294 = vunpack.c.h.b16 %v589
    %v1295 = vunpack.c.l.b16 %v590
    %v1296 = vunpack.c.l.b16 %v591
    %v1297 = vunpack.c.h.b16 %v591
    %v1298 = vunpack.c.l.b16 %v592
    %v1299 = vunpack.c.l.b16 %v593
    %v1300 = vunpack.c.h.b16 %v593
    %v1301 = vunpack.c.l.b16 %v594
    %v1302 = vunpack.c.l.b16 %v595
    %v1303 = vunpack.c.h.b16 %v595
    %v1304 = vunpack.c.l.b16 %v596
    %v1305 = vunpack.c.l.b16 %v597
    %v1306 = vunpack.c.h.b16 %v597
    %v1307 = vunpack.c.l.b16 %v598
    %v1308 = vunpack.c.l.b16 %v599
    %v1309 = vunpack.c.h.b16 %v599
    %v1310 = vunpack.c.l.b16 %v600
    %v1311 = vunpack.c.l.b16 %v601
    %v1312 = vunpack.c.h.b16 %v601
    %v1313 = vunpack.c.l.b16 %v602
    %v1314 = vunpack.c.l.b16 %v603
    %v1315 = vunpack.c.h.b16 %v603
    %v1316 = vunpack.c.l.b16 %v604
    %v1317 = vunpack.c.l.b16 %v605
    %v1318 = vunpack.c.h.b16 %v605
    %v1319 = vunpack.c.l.b16 %v606
    %v1320 = vunpack.c.l.b16 %v607
    %v1321 = vunpack.c.h.b16 %v607
    %v1322 = vunpack.c.l.b16 %v608
    %v1323 = vunpack.c.l.b16 %v609
    %v1324 = vunpack.c.h.b16 %v609
    %v1325 = vunpack.c.l.b16 %v610
    %v1326 = vunpack.c.l.b16 %v611
    %v1327 = vunpack.c.h.b16 %v611
    %v1328 = vunpack.c.l.b16 %v612
    %v1329 = vunpack.c.l.b16 %v613
    %v1330 = vunpack.c.h.b16 %v613
    %v1331 = vunpack.c.l.b16 %v614
    %v1332 = vunpack.c.l.b16 %v615
    %v1333 = vunpack.c.h.b16 %v615
    %v1334 = vunpack.c.l.b16 %v616
    %v1335 = vunpack.c.l.b16 %v617
    %v1336 = vunpack.c.h.b16 %v617
    %v1337 = vunpack.c.l.b16 %v618
    %v1338 = vunpack.c.l.b16 %v619
    %v1339 = vunpack.c.h.b16 %v619
    %v1340 = vunpack.c.l.b16 %v620
    %v1341 = vunpack.c.l.b16 %v621
    %v1342 = vunpack.c.h.b16 %v621
    %v1343 = vunpack.c.l.b16 %v622
    %v1344 = vunpack.c.l.b16 %v623
    %v1345 = vunpack.c.h.b16 %v623
    %v1346 = vunpack.c.l.b16 %v624
    %v1347 = vpack.c.b16 %v966, %v963
    %v1348 = vpack.c.b16 %v967, %v964
    %v1349 = vpack.c.b16 %v968, %v965
    %v1350 = vpack.c.b16 %v972, %v969
    %v1351 = vpack.c.b16 %v973, %v970
    %v1352 = vpack.c.b16 %v974, %v971
    %v1353 = vpack.c.b16 %v978, %v975
    %v1354 = vpack.c.b16 %v979, %v976
    %v1355 = vpack.c.b16 %v980, %v977
    %v1356 = vpack.c.b16 %v984, %v981
    %v1357 = vpack.c.b16 %v985, %v982
    %v1358 = vpack.c.b16 %v986, %v983
    %v1359 = vpack.c.b16 %v990, %v987
    %v1360 = vpack.c.b16 %v991, %v988
    %v1361 = vpack.c.b16 %v992, %v989
    %v1362 = vpack.c.b16 %v996, %v993
    %v1363 = vpack.c.b16 %v997, %v994
    %v1364 = vpack.c.b16 %v998, %v995
    %v1365 = vpack.c.b16 %v1002, %v999
    %v1366 = vpack.c.b16 %v1003, %v1000
    %v1367 = vpack.c.b16 %v1004, %v1001
    %v1368 = vpack.c.b16 %v1008, %v1005
    %v1369 = vpack.c.b16 %v1009, %v1006
    %v1370 = vpack.c.b16 %v1010, %v1007
    %v1371 = vpack.c.b16 %v1014, %v1011
    %v1372 = vpack.c.b16 %v1015, %v1012
    %v1373 = vpack.c.b16 %v1016, %v1013
    %v1374 = vpack.c.b16 %v1020, %v1017
    %v1375 = vpack.c.b16 %v1021, %v1018
    %v1376 = vpack.c.b16 %v1022, %v1019
    %v1377 = vpack.c.b16 %v1026, %v1023
    %v1378 = vpack.c.b16 %v1027, %v1024
    %v1379 = vpack.c.b16 %v1028, %v1025
    %v1380 = vpack.c.b16 %v1032, %v1029
    %v1381 = vpack.c.b16 %v1033, %v1030
    %v1382 = vpack.c.b16 %v1034, %v1031
    %v1383 = vpack.c.b16 %v1038, %v1035
    %v1384 = vpack.c.b16 %v1039, %v1036
    %v1385 = vpack.c.b16 %v1040, %v1037
    %v1386 = vpack.c.b16 %v1044, %v1041
    %v1387 = vpack.c.b16 %v1045, %v1042
    %v1388 = vpack.c.b16 %v1046, %v1043
    %v1389 = vpack.c.b16 %v1050, %v1047
    %v1390 = vpack.c.b16 %v1051, %v1048
    %v1391 = vpack.c.b16 %v1052, %v1049
    %v1392 = vpack.c.b16 %v1056, %v1053
    %v1393 = vpack.c.b16 %v1057, %v1054
    %v1394 = vpack.c.b16 %v1058, %v1055
    %v1395 = vpack.c.b16 %v1062, %v1059
    %v1396 = vpack.c.b16 %v1063, %v1060
    %v1397 = vpack.c.b16 %v1064, %v1061
    %v1398 = vpack.c.b16 %v1068, %v1065
    %v1399 = vpack.c.b16 %v1069, %v1066
    %v1400 = vpack.c.b16 %v1070, %v1067
    %v1401 = vpack.c.b16 %v1074, %v1071
    %v1402 = vpack.c.b16 %v1075, %v1072
    %v1403 = vpack.c.b16 %v1076, %v1073
    %v1404 = vpack.c.b16 %v1080, %v1077
    %v1405 = vpack.c.b16 %v1081, %v1078
    %v1406 = vpack.c.b16 %v1082, %v1079
    %v1407 = vpack.c.b16 %v1086, %v1083
    %v1408 = vpack.c.b16 %v1087, %v1084
    %v1409 = vpack.c.b16 %v1088, %v1085
    %v1410 = vpack.c.b16 %v1092, %v1089
    %v1411 = vpack.c.b16 %v1093, %v1090
    %v1412 = vpack.c.b16 %v1094, %v1091
    %v1413 = vpack.c.b16 %v1098, %v1095
    %v1414 = vpack.c.b16 %v1099, %v1096
    %v1415 = vpack.c.b16 %v1100, %v1097
    %v1416 = vpack.c.b16 %v1104, %v1101
    %v1417 = vpack.c.b16 %v1105, %v1102
    %v1418 = vpack.c.b16 %v1106, %v1103
    %v1419 = vpack.c.b16 %v1110, %v1107
    %v1420 = vpack.c.b16 %v1111, %v1108
    %v1421 = vpack.c.b16 %v1112, %v1109
    %v1422 = vpack.c.b16 %v1116, %v1113
    %v1423 = vpack.c.b16 %v1117, %v1114
    %v1424 = vpack.c.b16 %v1118, %v1115
    %v1425 = vpack.c.b16 %v1122, %v1119
    %v1426 = vpack.c.b16 %v1123, %v1120
    %v1427 = vpack.c.b16 %v1124, %v1121
    %v1428 = vpack.c.b16 %v1128, %v1125
    %v1429 = vpack.c.b16 %v1129, %v1126
    %v1430 = vpack.c.b16 %v1130, %v1127
    %v1431 = vpack.c.b16 %v1134, %v1131
    %v1432 = vpack.c.b16 %v1135, %v1132
    %v1433 = vpack.c.b16 %v1136, %v1133
    %v1434 = vpack.c.b16 %v1140, %v1137
    %v1435 = vpack.c.b16 %v1141, %v1138
    %v1436 = vpack.c.b16 %v1142, %v1139
    %v1437 = vpack.c.b16 %v1146, %v1143
    %v1438 = vpack.c.b16 %v1147, %v1144
    %v1439 = vpack.c.b16 %v1148, %v1145
    %v1440 = vpack.c.b16 %v1152, %v1149
    %v1441 = vpack.c.b16 %v1153, %v1150
    %v1442 = vpack.c.b16 %v1154, %v1151
    %v1443 = vpack.c.b16 %v1158, %v1155
    %v1444 = vpack.c.b16 %v1159, %v1156
    %v1445 = vpack.c.b16 %v1160, %v1157
    %v1446 = vpack.c.b16 %v1164, %v1161
    %v1447 = vpack.c.b16 %v1165, %v1162
    %v1448 = vpack.c.b16 %v1166, %v1163
    %v1449 = vpack.c.b16 %v1170, %v1167
    %v1450 = vpack.c.b16 %v1171, %v1168
    %v1451 = vpack.c.b16 %v1172, %v1169
    %v1452 = vpack.c.b16 %v1176, %v1173
    %v1453 = vpack.c.b16 %v1177, %v1174
    %v1454 = vpack.c.b16 %v1178, %v1175
    %v1455 = vpack.c.b16 %v1182, %v1179
    %v1456 = vpack.c.b16 %v1183, %v1180
    %v1457 = vpack.c.b16 %v1184, %v1181
    %v1458 = vpack.c.b16 %v1188, %v1185
    %v1459 = vpack.c.b16 %v1189, %v1186
    %v1460 = vpack.c.b16 %v1190, %v1187
    %v1461 = vpack.c.b16 %v1194, %v1191
    %v1462 = vpack.c.b16 %v1195, %v1192
    %v1463 = vpack.c.b16 %v1196, %v1193
    %v1464 = vpack.c.b16 %v1200, %v1197
    %v1465 = vpack.c.b16 %v1201, %v1198
    %v1466 = vpack.c.b16 %v1202, %v1199
    %v1467 = vpack.c.b16 %v1206, %v1203
    %v1468 = vpack.c.b16 %v1207, %v1204
    %v1469 = vpack.c.b16 %v1208, %v1205
    %v1470 = vpack.c.b16 %v1212, %v1209
    %v1471 = vpack.c.b16 %v1213, %v1210
    %v1472 = vpack.c.b16 %v1214, %v1211
    %v1473 = vpack.c.b16 %v1218, %v1215
    %v1474 = vpack.c.b16 %v1219, %v1216
    %v1475 = vpack.c.b16 %v1220, %v1217
    %v1476 = vpack.c.b16 %v1224, %v1221
    %v1477 = vpack.c.b16 %v1225, %v1222
    %v1478 = vpack.c.b16 %v1226, %v1223
    %v1479 = vpack.c.b16 %v1230, %v1227
    %v1480 = vpack.c.b16 %v1231, %v1228
    %v1481 = vpack.c.b16 %v1232, %v1229
    %v1482 = vpack.c.b16 %v1236, %v1233
    %v1483 = vpack.c.b16 %v1237, %v1234
    %v1484 = vpack.c.b16 %v1238, %v1235
    %v1485 = vpack.c.b16 %v1242, %v1239
    %v1486 = vpack.c.b16 %v1243, %v1240
    %v1487 = vpack.c.b16 %v1244, %v1241
    %v1488 = vpack.c.b16 %v1248, %v1245
    %v1489 = vpack.c.b16 %v1249, %v1246
    %v1490 = vpack.c.b16 %v1250, %v1247
    %v1491 = vpack.c.b16 %v1254, %v1251
    %v1492 = vpack.c.b16 %v1255, %v1252
    %v1493 = vpack.c.b16 %v1256, %v1253
    %v1494 = vpack.c.b16 %v1260, %v1257
    %v1495 = vpack.c.b16 %v1261, %v1258
    %v1496 = vpack.c.b16 %v1262, %v1259
    %v1497 = vpack.c.b16 %v1266, %v1263
    %v1498 = vpack.c.b16 %v1267, %v1264
    %v1499 = vpack.c.b16 %v1268, %v1265
    %v1500 = vpack.c.b16 %v1272, %v1269
    %v1501 = vpack.c.b16 %v1273, %v1270
    %v1502 = vpack.c.b16 %v1274, %v1271
    %v1503 = vpack.c.b16 %v1278, %v1275
    %v1504 = vpack.c.b16 %v1279, %v1276
    %v1505 = vpack.c.b16 %v1280, %v1277
    %v1506 = vpack.c.b16 %v1284, %v1281
    %v1507 = vpack.c.b16 %v1285, %v1282
    %v1508 = vpack.c.b16 %v1286, %v1283
    %v1509 = vpack.c.b16 %v1290, %v1287
    %v1510 = vpack.c.b16 %v1291, %v1288
    %v1511 = vpack.c.b16 %v1292, %v1289
    %v1512 = vpack.c.b16 %v1296, %v1293
    %v1513 = vpack.c.b16 %v1297, %v1294
    %v1514 = vpack.c.b16 %v1298, %v1295
    %v1515 = vpack.c.b16 %v1302, %v1299
    %v1516 = vpack.c.b16 %v1303, %v1300
    %v1517 = vpack.c.b16 %v1304, %v1301
    %v1518 = vpack.c.b16 %v1308, %v1305
    %v1519 = vpack.c.b16 %v1309, %v1306
    %v1520 = vpack.c.b16 %v1310, %v1307
    %v1521 = vpack.c.b16 %v1314, %v1311
    %v1522 = vpack.c.b16 %v1315, %v1312
    %v1523 = vpack.c.b16 %v1316, %v1313
    %v1524 = vpack.c.b16 %v1320, %v1317
    %v1525 = vpack.c.b16 %v1321, %v1318
    %v1526 = vpack.c.b16 %v1322, %v1319
    %v1527 = vpack.c.b16 %v1326, %v1323
    %v1528 = vpack.c.b16 %v1327, %v1324
    %v1529 = vpack.c.b16 %v1328, %v1325
    %v1530 = vpack.c.b16 %v1332, %v1329
    %v1531 = vpack.c.b16 %v1333, %v1330
    %v1532 = vpack.c.b16 %v1334, %v1331
    %v1533 = vpack.c.b16 %v1338, %v1335
    %v1534 = vpack.c.b16 %v1339, %v1336
    %v1535 = vpack.c.b16 %v1340, %v1337
    %v1536 = vpack.c.b16 %v1344, %v1341
    %v1537 = vpack.c.b16 %v1345, %v1342
    %v1538 = vpack.c.b16 %v1346, %v1343
    %1731 = vmatprep.subr.bf16.mxu0 %v1348
    %1732 = vmatpush1.bf16.msra.mxu0 %v1347
    %1733 = vmatprep.subr.bf16.mxu0 %v1351
    %1734 = vmatpush1.bf16.msra.mxu0 %v1350
    %1735 = vmatprep.subr.bf16.mxu0 %v1354
    %1736 = vmatpush1.bf16.msra.mxu0 %v1353
    %1737 = vmatprep.subr.bf16.mxu0 %v1357
    %1738 = vmatpush1.bf16.msra.mxu0 %v1356
    %1739 = vmatprep.subr.bf16.mxu0 %v1360
    %1740 = vmatpush1.bf16.msra.mxu0 %v1359
    %1741 = vmatprep.subr.bf16.mxu0 %v1363
    %1742 = vmatpush1.bf16.msra.mxu0 %v1362
    %1743 = vmatprep.subr.bf16.mxu0 %v1366
    %1744 = vmatpush1.bf16.msra.mxu0 %v1365
    %1745 = vmatprep.subr.bf16.mxu0 %v1369
    %1746 = vmatpush1.bf16.msra.mxu0 %v1368
    %1747 = vmatprep.subr.bf16.mxu0 %v1372
    %1748 = vmatpush1.bf16.msra.mxu0 %v1371
    %1749 = vmatprep.subr.bf16.mxu0 %v1375
    %1750 = vmatpush1.bf16.msra.mxu0 %v1374
    %1751 = vmatprep.subr.bf16.mxu0 %v1378
    %1752 = vmatpush1.bf16.msra.mxu0 %v1377
    %1753 = vmatprep.subr.bf16.mxu0 %v1381
    %1754 = vmatpush1.bf16.msra.mxu0 %v1380
    %1755 = vmatprep.subr.bf16.mxu0 %v1384
    %1756 = vmatpush1.bf16.msra.mxu0 %v1383
    %1757 = vmatprep.subr.bf16.mxu0 %v1387
    %1758 = vmatpush1.bf16.msra.mxu0 %v1386
    %1759 = vmatprep.subr.bf16.mxu0 %v1390
    %1760 = vmatpush1.bf16.msra.mxu0 %v1389
    %1761 = vmatprep.subr.bf16.mxu0 %v1393
    %1762 = vmatpush1.bf16.msra.mxu0 %v1392
    %1763 = vmatprep.mubr.bf16.mxu0 %v692
    %1764 = vmatmul.mubr.bf16.gmra.mrb[0].mxu0 %v691
    %v1765 = vpop.f32.mrb[0].mxu0
    %v1766 = vadd.f32 %v630, %v1765
    %v1767 = vpop.f32.mrb[0].mxu0
    %v1768 = vadd.f32 %v634, %v1767
    %v1769 = vpop.f32.mrb[0].mxu0
    %v1770 = vpop.f32.mrb[0].mxu0
    %1771 = vdwg.mxu0
    %1772 = vmatprep.subr.bf16.mxu0 %v1396
    %1773 = vmatpush1.bf16.msra.mxu0 %v1395
    %1774 = vmatprep.subr.bf16.mxu0 %v1399
    %1775 = vmatpush1.bf16.msra.mxu0 %v1398
    %1776 = vmatprep.subr.bf16.mxu0 %v1402
    %1777 = vmatpush1.bf16.msra.mxu0 %v1401
    %1778 = vmatprep.subr.bf16.mxu0 %v1405
    %1779 = vmatpush1.bf16.msra.mxu0 %v1404
    %1780 = vmatprep.subr.bf16.mxu0 %v1408
    %1781 = vmatpush1.bf16.msra.mxu0 %v1407
    %1782 = vmatprep.subr.bf16.mxu0 %v1411
    %1783 = vmatpush1.bf16.msra.mxu0 %v1410
    %1784 = vmatprep.subr.bf16.mxu0 %v1414
    %1785 = vmatpush1.bf16.msra.mxu0 %v1413
    %1786 = vmatprep.subr.bf16.mxu0 %v1417
    %1787 = vmatpush1.bf16.msra.mxu0 %v1416
    %1788 = vmatprep.subr.bf16.mxu0 %v1420
    %1789 = vmatpush1.bf16.msra.mxu0 %v1419
    %1790 = vmatprep.subr.bf16.mxu0 %v1423
    %1791 = vmatpush1.bf16.msra.mxu0 %v1422
    %1792 = vmatprep.subr.bf16.mxu0 %v1426
    %1793 = vmatpush1.bf16.msra.mxu0 %v1425
    %1794 = vmatprep.subr.bf16.mxu0 %v1429
    %1795 = vmatpush1.bf16.msra.mxu0 %v1428
    %1796 = vmatprep.subr.bf16.mxu0 %v1432
    %1797 = vmatpush1.bf16.msra.mxu0 %v1431
    %1798 = vmatprep.subr.bf16.mxu0 %v1435
    %1799 = vmatpush1.bf16.msra.mxu0 %v1434
    %1800 = vmatprep.subr.bf16.mxu0 %v1438
    %1801 = vmatpush1.bf16.msra.mxu0 %v1437
    %1802 = vmatprep.subr.bf16.mxu0 %v1441
    %1803 = vmatpush1.bf16.msra.mxu0 %v1440
    %1804 = vmatprep.mubr.bf16.mxu0 %v694
    %1805 = vmatmul.mubr.bf16.gmra.mrb[0].mxu0 %v693
    %v1806 = vpop.f32.mrb[0].mxu0
    %v1807 = vadd.f32 %v1766, %v1806
    %v1808 = vpop.f32.mrb[0].mxu0
    %v1809 = vadd.f32 %v1768, %v1808
    %v1810 = vpop.f32.mrb[0].mxu0
    %v1811 = vpop.f32.mrb[0].mxu0
    %1812 = vdwg.mxu0
    %1813 = vmatprep.subr.bf16.mxu0 %v1444
    %1814 = vmatpush1.bf16.msra.mxu0 %v1443
    %1815 = vmatprep.subr.bf16.mxu0 %v1447
    %1816 = vmatpush1.bf16.msra.mxu0 %v1446
    %1817 = vmatprep.subr.bf16.mxu0 %v1450
    %1818 = vmatpush1.bf16.msra.mxu0 %v1449
    %1819 = vmatprep.subr.bf16.mxu0 %v1453
    %1820 = vmatpush1.bf16.msra.mxu0 %v1452
    %1821 = vmatprep.subr.bf16.mxu0 %v1456
    %1822 = vmatpush1.bf16.msra.mxu0 %v1455
    %1823 = vmatprep.subr.bf16.mxu0 %v1459
    %1824 = vmatpush1.bf16.msra.mxu0 %v1458
    %1825 = vmatprep.subr.bf16.mxu0 %v1462
    %1826 = vmatpush1.bf16.msra.mxu0 %v1461
    %1827 = vmatprep.subr.bf16.mxu0 %v1465
    %1828 = vmatpush1.bf16.msra.mxu0 %v1464
    %1829 = vmatprep.subr.bf16.mxu0 %v1468
    %1830 = vmatpush1.bf16.msra.mxu0 %v1467
    %1831 = vmatprep.subr.bf16.mxu0 %v1471
    %1832 = vmatpush1.bf16.msra.mxu0 %v1470
    %1833 = vmatprep.subr.bf16.mxu0 %v1474
    %1834 = vmatpush1.bf16.msra.mxu0 %v1473
    %1835 = vmatprep.subr.bf16.mxu0 %v1477
    %1836 = vmatpush1.bf16.msra.mxu0 %v1476
    %1837 = vmatprep.subr.bf16.mxu0 %v1480
    %1838 = vmatpush1.bf16.msra.mxu0 %v1479
    %1839 = vmatprep.subr.bf16.mxu0 %v1483
    %1840 = vmatpush1.bf16.msra.mxu0 %v1482
    %1841 = vmatprep.subr.bf16.mxu0 %v1486
    %1842 = vmatpush1.bf16.msra.mxu0 %v1485
    %1843 = vmatprep.subr.bf16.mxu0 %v1489
    %1844 = vmatpush1.bf16.msra.mxu0 %v1488
    %1845 = vmatprep.mubr.bf16.mxu0 %v696
    %1846 = vmatmul.mubr.bf16.gmra.mrb[0].mxu0 %v695
    %v1847 = vpop.f32.mrb[0].mxu0
    %v1848 = vadd.f32 %v1807, %v1847
    %v1849 = vpop.f32.mrb[0].mxu0
    %v1850 = vadd.f32 %v1809, %v1849
    %v1851 = vpop.f32.mrb[0].mxu0
    %v1852 = vpop.f32.mrb[0].mxu0
    %1853 = vdwg.mxu0
    %1854 = vmatprep.subr.bf16.mxu0 %v1492
    %1855 = vmatpush1.bf16.msra.mxu0 %v1491
    %1856 = vmatprep.subr.bf16.mxu0 %v1495
    %1857 = vmatpush1.bf16.msra.mxu0 %v1494
    %1858 = vmatprep.subr.bf16.mxu0 %v1498
    %1859 = vmatpush1.bf16.msra.mxu0 %v1497
    %1860 = vmatprep.subr.bf16.mxu0 %v1501
    %1861 = vmatpush1.bf16.msra.mxu0 %v1500
    %1862 = vmatprep.subr.bf16.mxu0 %v1504
    %1863 = vmatpush1.bf16.msra.mxu0 %v1503
    %1864 = vmatprep.subr.bf16.mxu0 %v1507
    %1865 = vmatpush1.bf16.msra.mxu0 %v1506
    %1866 = vmatprep.subr.bf16.mxu0 %v1510
    %1867 = vmatpush1.bf16.msra.mxu0 %v1509
    %1868 = vmatprep.subr.bf16.mxu0 %v1513
    %1869 = vmatpush1.bf16.msra.mxu0 %v1512
    %1870 = vmatprep.subr.bf16.mxu0 %v1516
    %1871 = vmatpush1.bf16.msra.mxu0 %v1515
    %1872 = vmatprep.subr.bf16.mxu0 %v1519
    %1873 = vmatpush1.bf16.msra.mxu0 %v1518
    %1874 = vmatprep.subr.bf16.mxu0 %v1522
    %1875 = vmatpush1.bf16.msra.mxu0 %v1521
    %1876 = vmatprep.subr.bf16.mxu0 %v1525
    %1877 = vmatpush1.bf16.msra.mxu0 %v1524
    %1878 = vmatprep.subr.bf16.mxu0 %v1528
    %1879 = vmatpush1.bf16.msra.mxu0 %v1527
    %1880 = vmatprep.subr.bf16.mxu0 %v1531
    %1881 = vmatpush1.bf16.msra.mxu0 %v1530
    %1882 = vmatprep.subr.bf16.mxu0 %v1534
    %1883 = vmatpush1.bf16.msra.mxu0 %v1533
    %1884 = vmatprep.subr.bf16.mxu0 %v1537
    %1885 = vmatpush1.bf16.msra.mxu0 %v1536
    %1886 = vmatprep.mubr.bf16.mxu0 %v698
    %1887 = vmatmul.mubr.bf16.gmra.mrb[0].mxu0 %v697
    %v1888 = vpop.f32.mrb[0].mxu0
    %v1889 = vadd.f32 %v1848, %v1888
    %v1890 = vpop.f32.mrb[0].mxu0
    %v1891 = vadd.f32 %v1850, %v1890
    %v1892 = vpop.f32.mrb[0].mxu0
    %v1893 = vpop.f32.mrb[0].mxu0
    %1894 = vdwg.mxu0
    %1895 = vmatprep.subr.bf16.mxu0 0
    %1896 = vmatpush1.bf16.msra.mxu0 %v1349
    %1897 = vmatprep.subr.bf16.mxu0 0
    %1898 = vmatpush1.bf16.msra.mxu0 %v1352
    %1899 = vmatprep.subr.bf16.mxu0 0
    %1900 = vmatpush1.bf16.msra.mxu0 %v1355
    %1901 = vmatprep.subr.bf16.mxu0 0
    %1902 = vmatpush1.bf16.msra.mxu0 %v1358
    %1903 = vmatprep.subr.bf16.mxu0 0
    %1904 = vmatpush1.bf16.msra.mxu0 %v1361
    %1905 = vmatprep.subr.bf16.mxu0 0
    %1906 = vmatpush1.bf16.msra.mxu0 %v1364
    %1907 = vmatprep.subr.bf16.mxu0 0
    %1908 = vmatpush1.bf16.msra.mxu0 %v1367
    %1909 = vmatprep.subr.bf16.mxu0 0
    %1910 = vmatpush1.bf16.msra.mxu0 %v1370
    %1911 = vmatprep.subr.bf16.mxu0 0
    %1912 = vmatpush1.bf16.msra.mxu0 %v1373
    %1913 = vmatprep.subr.bf16.mxu0 0
    %1914 = vmatpush1.bf16.msra.mxu0 %v1376
    %1915 = vmatprep.subr.bf16.mxu0 0
    %1916 = vmatpush1.bf16.msra.mxu0 %v1379
    %1917 = vmatprep.subr.bf16.mxu0 0
    %1918 = vmatpush1.bf16.msra.mxu0 %v1382
    %1919 = vmatprep.subr.bf16.mxu0 0
    %1920 = vmatpush1.bf16.msra.mxu0 %v1385
    %1921 = vmatprep.subr.bf16.mxu0 0
    %1922 = vmatpush1.bf16.msra.mxu0 %v1388
    %1923 = vmatprep.subr.bf16.mxu0 0
    %1924 = vmatpush1.bf16.msra.mxu0 %v1391
    %1925 = vmatprep.subr.bf16.mxu0 0
    %1926 = vmatpush1.bf16.msra.mxu0 %v1394
    %1927 = vmatprep.mubr.bf16.mxu0 %v692
    %1928 = vmatmul.mubr.bf16.gmra.mrb[0].mxu0 %v691
    %v1929 = vpop.f32.mrb[0].mxu0
    %v1930 = vadd.f32 %v638, %v1929
    %v1931 = vpop.f32.mrb[0].mxu0
    %v1932 = vpop.f32.mrb[0].mxu0
    %v1933 = vpop.f32.mrb[0].mxu0
    %1934 = vdwg.mxu0
    %1935 = vmatprep.subr.bf16.mxu0 0
    %1936 = vmatpush1.bf16.msra.mxu0 %v1397
    %1937 = vmatprep.subr.bf16.mxu0 0
    %1938 = vmatpush1.bf16.msra.mxu0 %v1400
    %1939 = vmatprep.subr.bf16.mxu0 0
    %1940 = vmatpush1.bf16.msra.mxu0 %v1403
    %1941 = vmatprep.subr.bf16.mxu0 0
    %1942 = vmatpush1.bf16.msra.mxu0 %v1406
    %1943 = vmatprep.subr.bf16.mxu0 0
    %1944 = vmatpush1.bf16.msra.mxu0 %v1409
    %1945 = vmatprep.subr.bf16.mxu0 0
    %1946 = vmatpush1.bf16.msra.mxu0 %v1412
    %1947 = vmatprep.subr.bf16.mxu0 0
    %1948 = vmatpush1.bf16.msra.mxu0 %v1415
    %1949 = vmatprep.subr.bf16.mxu0 0
    %1950 = vmatpush1.bf16.msra.mxu0 %v1418
    %1951 = vmatprep.subr.bf16.mxu0 0
    %1952 = vmatpush1.bf16.msra.mxu0 %v1421
    %1953 = vmatprep.subr.bf16.mxu0 0
    %1954 = vmatpush1.bf16.msra.mxu0 %v1424
    %1955 = vmatprep.subr.bf16.mxu0 0
    %1956 = vmatpush1.bf16.msra.mxu0 %v1427
    %1957 = vmatprep.subr.bf16.mxu0 0
    %1958 = vmatpush1.bf16.msra.mxu0 %v1430
    %1959 = vmatprep.subr.bf16.mxu0 0
    %1960 = vmatpush1.bf16.msra.mxu0 %v1433
    %1961 = vmatprep.subr.bf16.mxu0 0
    %1962 = vmatpush1.bf16.msra.mxu0 %v1436
    %1963 = vmatprep.subr.bf16.mxu0 0
    %1964 = vmatpush1.bf16.msra.mxu0 %v1439
    %1965 = vmatprep.subr.bf16.mxu0 0
    %1966 = vmatpush1.bf16.msra.mxu0 %v1442
    %1967 = vmatprep.mubr.bf16.mxu0 %v694
    %1968 = vmatmul.mubr.bf16.gmra.mrb[0].mxu0 %v693
    %v1969 = vpop.f32.mrb[0].mxu0
    %v1970 = vadd.f32 %v1930, %v1969
    %v1971 = vpop.f32.mrb[0].mxu0
    %v1972 = vpop.f32.mrb[0].mxu0
    %v1973 = vpop.f32.mrb[0].mxu0
    %1974 = vdwg.mxu0
    %1975 = vmatprep.subr.bf16.mxu0 0
    %1976 = vmatpush1.bf16.msra.mxu0 %v1445
    %1977 = vmatprep.subr.bf16.mxu0 0
    %1978 = vmatpush1.bf16.msra.mxu0 %v1448
    %1979 = vmatprep.subr.bf16.mxu0 0
    %1980 = vmatpush1.bf16.msra.mxu0 %v1451
    %1981 = vmatprep.subr.bf16.mxu0 0
    %1982 = vmatpush1.bf16.msra.mxu0 %v1454
    %1983 = vmatprep.subr.bf16.mxu0 0
    %1984 = vmatpush1.bf16.msra.mxu0 %v1457
    %1985 = vmatprep.subr.bf16.mxu0 0
    %1986 = vmatpush1.bf16.msra.mxu0 %v1460
    %1987 = vmatprep.subr.bf16.mxu0 0
    %1988 = vmatpush1.bf16.msra.mxu0 %v1463
    %1989 = vmatprep.subr.bf16.mxu0 0
    %1990 = vmatpush1.bf16.msra.mxu0 %v1466
    %1991 = vmatprep.subr.bf16.mxu0 0
    %1992 = vmatpush1.bf16.msra.mxu0 %v1469
    %1993 = vmatprep.subr.bf16.mxu0 0
    %1994 = vmatpush1.bf16.msra.mxu0 %v1472
    %1995 = vmatprep.subr.bf16.mxu0 0
    %1996 = vmatpush1.bf16.msra.mxu0 %v1475
    %1997 = vmatprep.subr.bf16.mxu0 0
    %1998 = vmatpush1.bf16.msra.mxu0 %v1478
    %1999 = vmatprep.subr.bf16.mxu0 0
    %2000 = vmatpush1.bf16.msra.mxu0 %v1481
    %2001 = vmatprep.subr.bf16.mxu0 0
    %2002 = vmatpush1.bf16.msra.mxu0 %v1484
    %2003 = vmatprep.subr.bf16.mxu0 0
    %2004 = vmatpush1.bf16.msra.mxu0 %v1487
    %2005 = vmatprep.subr.bf16.mxu0 0
    %2006 = vmatpush1.bf16.msra.mxu0 %v1490
    %2007 = vmatprep.mubr.bf16.mxu0 %v696
    %2008 = vmatmul.mubr.bf16.gmra.mrb[0].mxu0 %v695
    %v2009 = vpop.f32.mrb[0].mxu0
    %v2010 = vadd.f32 %v1970, %v2009
    %v2011 = vpop.f32.mrb[0].mxu0
    %v2012 = vpop.f32.mrb[0].mxu0
    %v2013 = vpop.f32.mrb[0].mxu0
    %2014 = vdwg.mxu0
    %2015 = vmatprep.subr.bf16.mxu0 0
    %2016 = vmatpush1.bf16.msra.mxu0 %v1493
    %2017 = vmatprep.subr.bf16.mxu0 0
    %2018 = vmatpush1.bf16.msra.mxu0 %v1496
    %2019 = vmatprep.subr.bf16.mxu0 0
    %2020 = vmatpush1.bf16.msra.mxu0 %v1499
    %2021 = vmatprep.subr.bf16.mxu0 0
    %2022 = vmatpush1.bf16.msra.mxu0 %v1502
    %2023 = vmatprep.subr.bf16.mxu0 0
    %2024 = vmatpush1.bf16.msra.mxu0 %v1505
    %2025 = vmatprep.subr.bf16.mxu0 0
    %2026 = vmatpush1.bf16.msra.mxu0 %v1508
    %2027 = vmatprep.subr.bf16.mxu0 0
    %2028 = vmatpush1.bf16.msra.mxu0 %v1511
    %2029 = vmatprep.subr.bf16.mxu0 0
    %2030 = vmatpush1.bf16.msra.mxu0 %v1514
    %2031 = vmatprep.subr.bf16.mxu0 0
    %2032 = vmatpush1.bf16.msra.mxu0 %v1517
    %2033 = vmatprep.subr.bf16.mxu0 0
    %2034 = vmatpush1.bf16.msra.mxu0 %v1520
    %2035 = vmatprep.subr.bf16.mxu0 0
    %2036 = vmatpush1.bf16.msra.mxu0 %v1523
    %2037 = vmatprep.subr.bf16.mxu0 0
    %2038 = vmatpush1.bf16.msra.mxu0 %v1526
    %2039 = vmatprep.subr.bf16.mxu0 0
    %2040 = vmatpush1.bf16.msra.mxu0 %v1529
    %2041 = vmatprep.subr.bf16.mxu0 0
    %2042 = vmatpush1.bf16.msra.mxu0 %v1532
    %2043 = vmatprep.subr.bf16.mxu0 0
    %2044 = vmatpush1.bf16.msra.mxu0 %v1535
    %2045 = vmatprep.subr.bf16.mxu0 0
    %2046 = vmatpush1.bf16.msra.mxu0 %v1538
    %2047 = vmatprep.mubr.bf16.mxu0 %v698
    %2048 = vmatmul.mubr.bf16.gmra.mrb[0].mxu0 %v697
    %v2049 = vpop.f32.mrb[0].mxu0
    %v2050 = vadd.f32 %v2010, %v2049
    %v2051 = vpop.f32.mrb[0].mxu0
    %v2052 = vpop.f32.mrb[0].mxu0
    %v2053 = vpop.f32.mrb[0].mxu0
    %2054 = vdwg.mxu0
    %v2058 = vcombine.low %v1889, %v1891
    %v2060 = vunpack.c.l.s4 1983009808
    %v2061 = vunpack.c.0.s8 %v2060
    %v2062 = vlaneseq
    %v2063 = vshrl.u32 %v2062, 7
    %v2064 = vsub.s32 %v2061, %v2063
    %v2065 = vrot.slane %v2058, %v2064
    %v2067 = vunpack.c.l.s4 1983009808
    %v2068 = vunpack.c.0.s8 %v2067
    %v2069 = vlaneseq
    %v2070 = vshrl.u32 %v2069, 7
    %v2071 = vsub.s32 %v2068, %v2070
    %v2072 = vrot.slane %v2050, %v2071
    %v2073 = vcombine.low %v2065, %v2072
    %2075 = vst [vmem:[#allocation2] sm:$0x3f] %v2073
    %v2076 = vld [vmem:[#allocation9] sm:$0xff]
    %v2077 = vld [vmem:[#allocation9 + $0x8] sm:$0xf]
    %v2078 = vld [vmem:[#allocation9 + $0xc] sm:$0xff]
    %v2079 = vld [vmem:[#allocation9 + $0x14] sm:$0xf]
    %v2080 = vld [vmem:[#allocation9 + $0x18] sm:$0xff]
    %v2081 = vld [vmem:[#allocation9 + $0x20] sm:$0xf]
    %v2082 = vld [vmem:[#allocation9 + $0x24] sm:$0xff]
    %v2083 = vld [vmem:[#allocation9 + $0x2c] sm:$0xf]
    %v2084 = vld [vmem:[#allocation9 + $0x30] sm:$0xff]
    %v2085 = vld [vmem:[#allocation9 + $0x38] sm:$0xf]
    %v2086 = vld [vmem:[#allocation9 + $0x3c] sm:$0xff]
    %v2087 = vld [vmem:[#allocation9 + $0x44] sm:$0xf]
    %v2088 = vld [vmem:[#allocation9 + $0x48] sm:$0xff]
    %v2089 = vld [vmem:[#allocation9 + $0x50] sm:$0xf]
    %v2090 = vld [vmem:[#allocation9 + $0x54] sm:$0xff]
    %v2091 = vld [vmem:[#allocation9 + $0x5c] sm:$0xf]
    %v2092 = vld [vmem:[#allocation9 + $0x60] sm:$0xff]
    %v2093 = vld [vmem:[#allocation9 + $0x68] sm:$0xf]
    %v2094 = vld [vmem:[#allocation9 + $0x6c] sm:$0xff]
    %v2095 = vld [vmem:[#allocation9 + $0x74] sm:$0xf]
    %v2096 = vld [vmem:[#allocation9 + $0x78] sm:$0xff]
    %v2097 = vld [vmem:[#allocation9 + $0x80] sm:$0xf]
    %v2098 = vld [vmem:[#allocation9 + $0x84] sm:$0xff]
    %v2099 = vld [vmem:[#allocation9 + $0x8c] sm:$0xf]
    %v2100 = vld [vmem:[#allocation9 + $0x90] sm:$0xff]
    %v2101 = vld [vmem:[#allocation9 + $0x98] sm:$0xf]
    %v2102 = vld [vmem:[#allocation9 + $0x9c] sm:$0xff]
    %v2103 = vld [vmem:[#allocation9 + $0xa4] sm:$0xf]
    %v2104 = vld [vmem:[#allocation9 + $0xa8] sm:$0xff]
    %v2105 = vld [vmem:[#allocation9 + $0xb0] sm:$0xf]
    %v2106 = vld [vmem:[#allocation9 + $0xb4] sm:$0xff]
    %v2107 = vld [vmem:[#allocation9 + $0xbc] sm:$0xf]
    %v2108 = vld [vmem:[%s7] sm:$0x7]
    %v2109 = vld [vmem:[#allocation2] ss:$2 sm:$0x7]
    %v2142 = vunpack.c.l.b16 %v2076
    %v2143 = vunpack.c.h.b16 %v2076
    %v2144 = vunpack.c.l.b16 %v2077
    %v2145 = vunpack.c.l.b16 %v2078
    %v2146 = vunpack.c.h.b16 %v2078
    %v2147 = vunpack.c.l.b16 %v2079
    %v2148 = vunpack.c.l.b16 %v2080
    %v2149 = vunpack.c.h.b16 %v2080
    %v2150 = vunpack.c.l.b16 %v2081
    %v2151 = vunpack.c.l.b16 %v2082
    %v2152 = vunpack.c.h.b16 %v2082
    %v2153 = vunpack.c.l.b16 %v2083
    %v2154 = vunpack.c.l.b16 %v2084
    %v2155 = vunpack.c.h.b16 %v2084
    %v2156 = vunpack.c.l.b16 %v2085
    %v2157 = vunpack.c.l.b16 %v2086
    %v2158 = vunpack.c.h.b16 %v2086
    %v2159 = vunpack.c.l.b16 %v2087
    %v2160 = vunpack.c.l.b16 %v2088
    %v2161 = vunpack.c.h.b16 %v2088
    %v2162 = vunpack.c.l.b16 %v2089
    %v2163 = vunpack.c.l.b16 %v2090
    %v2164 = vunpack.c.h.b16 %v2090
    %v2165 = vunpack.c.l.b16 %v2091
    %v2166 = vunpack.c.l.b16 %v2092
    %v2167 = vunpack.c.h.b16 %v2092
    %v2168 = vunpack.c.l.b16 %v2093
    %v2169 = vunpack.c.l.b16 %v2094
    %v2170 = vunpack.c.h.b16 %v2094
    %v2171 = vunpack.c.l.b16 %v2095
    %v2172 = vunpack.c.l.b16 %v2096
    %v2173 = vunpack.c.h.b16 %v2096
    %v2174 = vunpack.c.l.b16 %v2097
    %v2175 = vunpack.c.l.b16 %v2098
    %v2176 = vunpack.c.h.b16 %v2098
    %v2177 = vunpack.c.l.b16 %v2099
    %v2178 = vunpack.c.l.b16 %v2100
    %v2179 = vunpack.c.h.b16 %v2100
    %v2180 = vunpack.c.l.b16 %v2101
    %v2181 = vunpack.c.l.b16 %v2102
    %v2182 = vunpack.c.h.b16 %v2102
    %v2183 = vunpack.c.l.b16 %v2103
    %v2184 = vunpack.c.l.b16 %v2104
    %v2185 = vunpack.c.h.b16 %v2104
    %v2186 = vunpack.c.l.b16 %v2105
    %v2187 = vunpack.c.l.b16 %v2106
    %v2188 = vunpack.c.h.b16 %v2106
    %v2189 = vunpack.c.l.b16 %v2107
    %v2190 = vpack.c.b16 %v2145, %v2142
    %v2191 = vpack.c.b16 %v2146, %v2143
    %v2192 = vpack.c.b16 %v2147, %v2144
    %v2193 = vpack.c.b16 %v2151, %v2148
    %v2194 = vpack.c.b16 %v2152, %v2149
    %v2195 = vpack.c.b16 %v2153, %v2150
    %v2196 = vpack.c.b16 %v2157, %v2154
    %v2197 = vpack.c.b16 %v2158, %v2155
    %v2198 = vpack.c.b16 %v2159, %v2156
    %v2199 = vpack.c.b16 %v2163, %v2160
    %v2200 = vpack.c.b16 %v2164, %v2161
    %v2201 = vpack.c.b16 %v2165, %v2162
    %v2202 = vpack.c.b16 %v2169, %v2166
    %v2203 = vpack.c.b16 %v2170, %v2167
    %v2204 = vpack.c.b16 %v2171, %v2168
    %v2205 = vpack.c.b16 %v2175, %v2172
    %v2206 = vpack.c.b16 %v2176, %v2173
    %v2207 = vpack.c.b16 %v2177, %v2174
    %v2208 = vpack.c.b16 %v2181, %v2178
    %v2209 = vpack.c.b16 %v2182, %v2179
    %v2210 = vpack.c.b16 %v2183, %v2180
    %v2211 = vpack.c.b16 %v2187, %v2184
    %v2212 = vpack.c.b16 %v2188, %v2185
    %v2213 = vpack.c.b16 %v2189, %v2186
    %v2239 = vlaneseq
    %v2240 = vshrl.u32 %v2239, 7
    %v2241 = vsub.s32 0, %v2240
    %v2242 = vrot.slane %v2108, %v2241
    %v2243 = vlaneseq
    %v2244 = vshrl.u32 %v2243, 7
    %v2245 = vsub.s32 1, %v2244
    %v2246 = vrot.slane %v2108, %v2245
    %v2247 = vlaneseq
    %v2248 = vshrl.u32 %v2247, 7
    %v2249 = vsub.s32 2, %v2248
    %v2250 = vrot.slane %v2108, %v2249
    %2254 = vmatprep.subr.bf16.mxu0 %v2191
    %2255 = vmatpush1.bf16.msra.mxu0 %v2190
    %2256 = vmatprep.subr.bf16.mxu0 %v2194
    %2257 = vmatpush1.bf16.msra.mxu0 %v2193
    %2258 = vmatprep.subr.bf16.mxu0 %v2197
    %2259 = vmatpush1.bf16.msra.mxu0 %v2196
    %2260 = vmatprep.subr.bf16.mxu0 %v2200
    %2261 = vmatpush1.bf16.msra.mxu0 %v2199
    %2262 = vmatprep.subr.bf16.mxu0 %v2203
    %2263 = vmatpush1.bf16.msra.mxu0 %v2202
    %2264 = vmatprep.subr.bf16.mxu0 %v2206
    %2265 = vmatpush1.bf16.msra.mxu0 %v2205
    %2266 = vmatprep.subr.bf16.mxu0 %v2209
    %2267 = vmatpush1.bf16.msra.mxu0 %v2208
    %2268 = vmatprep.subr.bf16.mxu0 %v2212
    %2269 = vmatpush1.bf16.msra.mxu0 %v2211
    %2270 = vmatprep.subr.bf16.mxu0 0
    %2271 = vmatpush1.bf16.msra.mxu0 0
    %2272 = vmatprep.subr.bf16.mxu0 0
    %2273 = vmatpush1.bf16.msra.mxu0 0
    %2274 = vmatprep.subr.bf16.mxu0 0
    %2275 = vmatpush1.bf16.msra.mxu0 0
    %2276 = vmatprep.subr.bf16.mxu0 0
    %2277 = vmatpush1.bf16.msra.mxu0 0
    %2278 = vmatprep.subr.bf16.mxu0 0
    %2279 = vmatpush1.bf16.msra.mxu0 0
    %2280 = vmatprep.subr.bf16.mxu0 0
    %2281 = vmatpush1.bf16.msra.mxu0 0
    %2282 = vmatprep.subr.bf16.mxu0 0
    %2283 = vmatpush1.bf16.msra.mxu0 0
    %2284 = vmatprep.subr.bf16.mxu0 0
    %2285 = vmatpush1.bf16.msra.mxu0 0
    %2286 = vmatprep.mubr.bf16.mxu0 0
    %2287 = vmatmul.mubr.bf16.gmra.mrb[0].mxu0 0
    %v2288 = vpop.f32.mrb[0].mxu0
    %v2289 = vadd.f32 %v2242, %v2288
    %v2290 = vpop.f32.mrb[0].mxu0
    %v2291 = vadd.f32 %v2246, %v2290
    %v2292 = vpop.f32.mrb[0].mxu0
    %v2293 = vpop.f32.mrb[0].mxu0
    %2294 = vdwg.mxu0
    %2295 = vmatprep.subr.bf16.mxu0 0
    %2296 = vmatpush1.bf16.msra.mxu0 %v2192
    %2297 = vmatprep.subr.bf16.mxu0 0
    %2298 = vmatpush1.bf16.msra.mxu0 %v2195
    %2299 = vmatprep.subr.bf16.mxu0 0
    %2300 = vmatpush1.bf16.msra.mxu0 %v2198
    %2301 = vmatprep.subr.bf16.mxu0 0
    %2302 = vmatpush1.bf16.msra.mxu0 %v2201
    %2303 = vmatprep.subr.bf16.mxu0 0
    %2304 = vmatpush1.bf16.msra.mxu0 %v2204
    %2305 = vmatprep.subr.bf16.mxu0 0
    %2306 = vmatpush1.bf16.msra.mxu0 %v2207
    %2307 = vmatprep.subr.bf16.mxu0 0
    %2308 = vmatpush1.bf16.msra.mxu0 %v2210
    %2309 = vmatprep.subr.bf16.mxu0 0
    %2310 = vmatpush1.bf16.msra.mxu0 %v2213
    %2311 = vmatprep.subr.bf16.mxu0 0
    %2312 = vmatpush1.bf16.msra.mxu0 0
    %2313 = vmatprep.subr.bf16.mxu0 0
    %2314 = vmatpush1.bf16.msra.mxu0 0
    %2315 = vmatprep.subr.bf16.mxu0 0
    %2316 = vmatpush1.bf16.msra.mxu0 0
    %2317 = vmatprep.subr.bf16.mxu0 0
    %2318 = vmatpush1.bf16.msra.mxu0 0
    %2319 = vmatprep.subr.bf16.mxu0 0
    %2320 = vmatpush1.bf16.msra.mxu0 0
    %2321 = vmatprep.subr.bf16.mxu0 0
    %2322 = vmatpush1.bf16.msra.mxu0 0
    %2323 = vmatprep.subr.bf16.mxu0 0
    %2324 = vmatpush1.bf16.msra.mxu0 0
    %2325 = vmatprep.subr.bf16.mxu0 0
    %2326 = vmatpush1.bf16.msra.mxu0 0
    %2327 = vmatprep.mubr.bf16.mxu0 0
    %2328 = vmatmul.mubr.bf16.gmra.mrb[0].mxu0 0
    %v2329 = vpop.f32.mrb[0].mxu0
    %v2330 = vadd.f32 %v2250, %v2329
    %v2331 = vpop.f32.mrb[0].mxu0
    %v2332 = vpop.f32.mrb[0].mxu0
    %v2333 = vpop.f32.mrb[0].mxu0
    %2334 = vdwg.mxu0
    %v2335 = vadd.f32 %v2109, %v2289
    %v2336 = vxor.u32 %v2335, 2147483648
    %v2337 = vmul.f32 %v2336, 1.442695
    %v2338 = vpow.pop %v2337
    %v2339 = vadd.f32 %v2338, 1.0
    %v2340 = vrcp.pop %v2339
    %v2341 = vmul.f32 1.0, %v2340
    %v2343 = vrot.slane %v2109, 1
    %v2345 = vadd.f32 %v2343, %v2291
    %v2346 = vxor.u32 %v2345, 2147483648
    %v2347 = vmul.f32 %v2346, 1.442695
    %v2348 = vpow.pop %v2347
    %v2349 = vadd.f32 %v2348, 1.0
    %v2350 = vrcp.pop %v2349
    %v2351 = vmul.f32 1.0, %v2350
    %v2352 = vmul.f32 %v2341, %v2330
    %v2353 = vrot.slane %v2109, 2
    %v2355 = vadd.f32 %v2353, %v2352
    %v2356 = vtanh.pop %v2355
    %v2357 = vsub.f32 1.0, %v2351
    %v2358 = vmul.f32 %v2357, %v2356
    %v2359 = vmul.f32 %v2351, 0.0
    %v2360 = vadd.f32 %v2358, %v2359
    %s2361 = scalar_lea.vmem [#allocation2], 1
    %v2362 = vld [vmem:[%s2361] ss:$2 sm:$0x7]
    %v2363 = vpack.c.bf16 %v2360, %v2360
    %2364 = vmatprep.subr.bf16.mxu0 %v2191
    %2365 = vmatpush1.bf16.msra.mxu0 %v2190
    %2366 = vmatprep.subr.bf16.mxu0 %v2194
    %2367 = vmatpush1.bf16.msra.mxu0 %v2193
    %2368 = vmatprep.subr.bf16.mxu0 %v2197
    %2369 = vmatpush1.bf16.msra.mxu0 %v2196
    %2370 = vmatprep.subr.bf16.mxu0 %v2200
    %2371 = vmatpush1.bf16.msra.mxu0 %v2199
    %2372 = vmatprep.subr.bf16.mxu0 %v2203
    %2373 = vmatpush1.bf16.msra.mxu0 %v2202
    %2374 = vmatprep.subr.bf16.mxu0 %v2206
    %2375 = vmatpush1.bf16.msra.mxu0 %v2205
    %2376 = vmatprep.subr.bf16.mxu0 %v2209
    %2377 = vmatpush1.bf16.msra.mxu0 %v2208
    %2378 = vmatprep.subr.bf16.mxu0 %v2212
    %2379 = vmatpush1.bf16.msra.mxu0 %v2211
    %2380 = vmatprep.subr.bf16.mxu0 0
    %2381 = vmatpush1.bf16.msra.mxu0 0
    %2382 = vmatprep.subr.bf16.mxu0 0
    %2383 = vmatpush1.bf16.msra.mxu0 0
    %2384 = vmatprep.subr.bf16.mxu0 0
    %2385 = vmatpush1.bf16.msra.mxu0 0
    %2386 = vmatprep.subr.bf16.mxu0 0
    %2387 = vmatpush1.bf16.msra.mxu0 0
    %2388 = vmatprep.subr.bf16.mxu0 0
    %2389 = vmatpush1.bf16.msra.mxu0 0
    %2390 = vmatprep.subr.bf16.mxu0 0
    %2391 = vmatpush1.bf16.msra.mxu0 0
    %2392 = vmatprep.subr.bf16.mxu0 0
    %2393 = vmatpush1.bf16.msra.mxu0 0
    %2394 = vmatprep.subr.bf16.mxu0 0
    %2395 = vmatpush1.bf16.msra.mxu0 0
    %2396 = vmatprep.mubr.bf16.mxu0 0
    %2397 = vmatmul.mubr.bf16.gmra.mrb[0].mxu0 %v2363
    %v2398 = vpop.f32.mrb[0].mxu0
    %v2399 = vadd.f32 %v2242, %v2398
    %v2400 = vpop.f32.mrb[0].mxu0
    %v2401 = vadd.f32 %v2246, %v2400
    %v2402 = vpop.f32.mrb[0].mxu0
    %v2403 = vpop.f32.mrb[0].mxu0
    %2404 = vdwg.mxu0
    %2405 = vmatprep.subr.bf16.mxu0 0
    %2406 = vmatpush1.bf16.msra.mxu0 %v2192
    %2407 = vmatprep.subr.bf16.mxu0 0
    %2408 = vmatpush1.bf16.msra.mxu0 %v2195
    %2409 = vmatprep.subr.bf16.mxu0 0
    %2410 = vmatpush1.bf16.msra.mxu0 %v2198
    %2411 = vmatprep.subr.bf16.mxu0 0
    %2412 = vmatpush1.bf16.msra.mxu0 %v2201
    %2413 = vmatprep.subr.bf16.mxu0 0
    %2414 = vmatpush1.bf16.msra.mxu0 %v2204
    %2415 = vmatprep.subr.bf16.mxu0 0
    %2416 = vmatpush1.bf16.msra.mxu0 %v2207
    %2417 = vmatprep.subr.bf16.mxu0 0
    %2418 = vmatpush1.bf16.msra.mxu0 %v2210
    %2419 = vmatprep.subr.bf16.mxu0 0
    %2420 = vmatpush1.bf16.msra.mxu0 %v2213
    %2421 = vmatprep.subr.bf16.mxu0 0
    %2422 = vmatpush1.bf16.msra.mxu0 0
    %2423 = vmatprep.subr.bf16.mxu0 0
    %2424 = vmatpush1.bf16.msra.mxu0 0
    %2425 = vmatprep.subr.bf16.mxu0 0
    %2426 = vmatpush1.bf16.msra.mxu0 0
    %2427 = vmatprep.subr.bf16.mxu0 0
    %2428 = vmatpush1.bf16.msra.mxu0 0
    %2429 = vmatprep.subr.bf16.mxu0 0
    %2430 = vmatpush1.bf16.msra.mxu0 0
    %2431 = vmatprep.subr.bf16.mxu0 0
    %2432 = vmatpush1.bf16.msra.mxu0 0
    %2433 = vmatprep.subr.bf16.mxu0 0
    %2434 = vmatpush1.bf16.msra.mxu0 0
    %2435 = vmatprep.subr.bf16.mxu0 0
    %2436 = vmatpush1.bf16.msra.mxu0 0
    %2437 = vmatprep.mubr.bf16.mxu0 0
    %2438 = vmatmul.mubr.bf16.gmra.mrb[0].mxu0 %v2363
    %v2439 = vpop.f32.mrb[0].mxu0
    %v2440 = vadd.f32 %v2250, %v2439
    %v2441 = vpop.f32.mrb[0].mxu0
    %v2442 = vpop.f32.mrb[0].mxu0
    %v2443 = vpop.f32.mrb[0].mxu0
    %2444 = vdwg.mxu0
    %v2445 = vadd.f32 %v2362, %v2399
    %v2446 = vxor.u32 %v2445, 2147483648
    %v2447 = vmul.f32 %v2446, 1.442695
    %v2448 = vpow.pop %v2447
    %v2449 = vadd.f32 %v2448, 1.0
    %v2450 = vrcp.pop %v2449
    %v2451 = vmul.f32 1.0, %v2450
    %v2453 = vrot.slane %v2362, 1
    %v2455 = vadd.f32 %v2453, %v2401
    %v2456 = vxor.u32 %v2455, 2147483648
    %v2457 = vmul.f32 %v2456, 1.442695
    %v2458 = vpow.pop %v2457
    %v2459 = vadd.f32 %v2458, 1.0
    %v2460 = vrcp.pop %v2459
    %v2461 = vmul.f32 1.0, %v2460
    %v2462 = vmul.f32 %v2451, %v2440
    %v2463 = vrot.slane %v2362, 2
    %v2465 = vadd.f32 %v2463, %v2462
    %v2466 = vtanh.pop %v2465
    %v2467 = vsub.f32 1.0, %v2461
    %v2468 = vmul.f32 %v2467, %v2466
    %v2469 = vmul.f32 %v2461, %v2360
    %v2470 = vadd.f32 %v2468, %v2469
    %v2471 = vld [vmem:[#allocation11] sm:$0xff]
    %v2472 = vld [vmem:[#allocation11 + $0x8] sm:$0xff]
    %v2473 = vld [vmem:[#allocation11 + $0x10] sm:$0xff]
    %v2474 = vld [vmem:[#allocation11 + $0x18] sm:$0xff]
    %v2475 = vld [vmem:[#allocation11 + $0x20] sm:$0xff]
    %v2476 = vld [vmem:[#allocation11 + $0x28] sm:$0xff]
    %v2477 = vld [vmem:[#allocation11 + $0x30] sm:$0xff]
    %v2478 = vld [vmem:[#allocation11 + $0x38] sm:$0xff]
    %v2479 = vld [vmem:[#allocation11 + $0x40] sm:$0xff]
    %v2480 = vld [vmem:[#allocation11 + $0x48] sm:$0xff]
    %v2481 = vld [vmem:[#allocation11 + $0x50] sm:$0xff]
    %v2482 = vld [vmem:[#allocation11 + $0x58] sm:$0xff]
    %v2483 = vld [vmem:[#allocation11 + $0x60] sm:$0xff]
    %v2484 = vld [vmem:[#allocation11 + $0x68] sm:$0xff]
    %v2485 = vld [vmem:[#allocation11 + $0x70] sm:$0xff]
    %v2486 = vld [vmem:[#allocation11 + $0x78] sm:$0xff]
    %v2487 = vld [vmem:[%s9] sm:$0x1]
    %2488 = vmatprep.subr.mxu0 0.0
    %2489 = vmatpush1.msra.mxu0 %v2471
    %2490 = vmatprep.subr.mxu0 0.0
    %2491 = vmatpush1.msra.mxu0 %v2472
    %2492 = vmatprep.subr.mxu0 0.0
    %2493 = vmatpush1.msra.mxu0 %v2473
    %2494 = vmatprep.subr.mxu0 0.0
    %2495 = vmatpush1.msra.mxu0 %v2474
    %2496 = vmatprep.subr.mxu0 0.0
    %2497 = vmatpush1.msra.mxu0 %v2475
    %2498 = vmatprep.subr.mxu0 0.0
    %2499 = vmatpush1.msra.mxu0 %v2476
    %2500 = vmatprep.subr.mxu0 0.0
    %2501 = vmatpush1.msra.mxu0 %v2477
    %2502 = vmatprep.subr.mxu0 0.0
    %2503 = vmatpush1.msra.mxu0 %v2478
    %2504 = vmatprep.subr.mxu0 0.0
    %2505 = vmatpush1.msra.mxu0 %v2479
    %2506 = vmatprep.subr.mxu0 0.0
    %2507 = vmatpush1.msra.mxu0 %v2480
    %2508 = vmatprep.subr.mxu0 0.0
    %2509 = vmatpush1.msra.mxu0 %v2481
    %2510 = vmatprep.subr.mxu0 0.0
    %2511 = vmatpush1.msra.mxu0 %v2482
    %2512 = vmatprep.subr.mxu0 0.0
    %2513 = vmatpush1.msra.mxu0 %v2483
    %2514 = vmatprep.subr.mxu0 0.0
    %2515 = vmatpush1.msra.mxu0 %v2484
    %2516 = vmatprep.subr.mxu0 0.0
    %2517 = vmatpush1.msra.mxu0 %v2485
    %2518 = vmatprep.subr.mxu0 0.0
    %2519 = vmatpush1.msra.mxu0 %v2486
    %2520 = vmatprep.subr.mxu0 0.0
    %2521 = vmatpush1.msra.mxu0 0.0
    %2522 = vmatprep.subr.mxu0 0.0
    %2523 = vmatpush1.msra.mxu0 0.0
    %2524 = vmatprep.subr.mxu0 0.0
    %2525 = vmatpush1.msra.mxu0 0.0
    %2526 = vmatprep.subr.mxu0 0.0
    %2527 = vmatpush1.msra.mxu0 0.0
    %2528 = vmatprep.subr.mxu0 0.0
    %2529 = vmatpush1.msra.mxu0 0.0
    %2530 = vmatprep.subr.mxu0 0.0
    %2531 = vmatpush1.msra.mxu0 0.0
    %2532 = vmatprep.subr.mxu0 0.0
    %2533 = vmatpush1.msra.mxu0 0.0
    %2534 = vmatprep.subr.mxu0 0.0
    %2535 = vmatpush1.msra.mxu0 0.0
    %2536 = vmatprep.subr.mxu0 0.0
    %2537 = vmatpush1.msra.mxu0 0.0
    %2538 = vmatprep.subr.mxu0 0.0
    %2539 = vmatpush1.msra.mxu0 0.0
    %2540 = vmatprep.subr.mxu0 0.0
    %2541 = vmatpush1.msra.mxu0 0.0
    %2542 = vmatprep.subr.mxu0 0.0
    %2543 = vmatpush1.msra.mxu0 0.0
    %2544 = vmatprep.subr.mxu0 0.0
    %2545 = vmatpush1.msra.mxu0 0.0
    %2546 = vmatprep.subr.mxu0 0.0
    %2547 = vmatpush1.msra.mxu0 0.0
    %2548 = vmatprep.subr.mxu0 0.0
    %2549 = vmatpush1.msra.mxu0 0.0
    %2550 = vmatprep.subr.mxu0 0.0
    %2551 = vmatpush1.msra.mxu0 0.0
    %2552 = vmatprep.mubr.f32.mxu0 0.0
    %2553 = vmatmul.mubr.f32.gmra.mrb[0].mxu0 %v2470
    %v2554 = vpop.f32.mrb[0].mxu0
    %v2555 = vadd.f32 %v2487, %v2554
    %v2556 = vpop.f32.mrb[0].mxu0
    %2557 = vdwg.mxu0
    %v2558 = vxor.u32 %v2555, 2147483648
    %v2559 = vmul.f32 %v2558, 1.442695
    %v2560 = vpow.pop %v2559
    %v2561 = vadd.f32 %v2560, 1.0
    %v2562 = vrcp.pop %v2561
    %v2563 = vmul.f32 1.0, %v2562
    %v2564 = vmul.f32 %v2555, %v2563
    %2565 = vst [vmem:[#allocation12] sm:$0x1] %v2564
    // Predicated region
    $region62: #{tpu_custom_call.1} parent=1 // pred_check
      _
    $region63: #{tpu_custom_call.1} parent=1 // pred_check_branch
      %2567 = sbr.rel (0) target = $region65
    $region64: #{tpu_custom_call.1} parent=1 // pred_region
      %s2569 = ssub.s32 16, 16
      %2570 = vsyncadd [#allocation5], %s2569
      %s2572 = sshll.u32 [#allocation12], 4
      %s2573 = int_to_ptr.vmem [resolvable:$true] %s2572
      %2575 = dma.vmem_to_hbm [thread:$0]  %s2573, 16, %s10, [#allocation5]
    $region65: #{tpu_custom_call.1} parent=1 // pred_fallthru
      _
    // Predicated region
    $region66: #{tpu_custom_call.1} parent=1 // pred_check
      _
    $region67: #{tpu_custom_call.1} parent=1 // pred_check_branch
      %2577 = sbr.rel (0) target = $region69
    $region68: #{tpu_custom_call.1} parent=1 // pred_region
      %2578 = dma.done [#allocation5], 16
    $region69: #{tpu_custom_call.1} parent=1 // pred_fallthru
      _
    %2579 = vsyncpa [#allocation4], 1
    %2580 = vsyncpa [#allocation7], 1
    %2581 = vsyncpa [#allocation10], 1
    %2582 = vsyncpa [#allocation5], 1

</llo_original>
